<compile_context>
chip_gen: v7x
topology: tpu7x:2x2x1
jax: 0.10.0
libtpu: 0.0.40
codegen_flags: <defaults>
</compile_context>

<pallas_src>
import jax
import jax.numpy as jnp
from jax.experimental import pallas as pl
from jax.experimental.pallas import tpu as pltpu


def _round_up(x, m):
    return ((x + m - 1) // m) * m


# ---------------------------------------------------------------------------
# Fused Pallas kernel: all GIN layers + global_mean_pool + lin1/relu/lin2
# ---------------------------------------------------------------------------
def _gin_fused_kernel(a_ref, x_ref, w1_ref, b1_ref, w2_ref, b2_ref,
                      p_ref, lw1_ref, lb1_ref, lw2_ref, lb2_ref,
                      o_ref, h_ref):
    layer = pl.program_id(0)
    last = pl.num_programs(0) - 1

    # Layer 0 seeds the VMEM-resident (bf16) activation from the padded input.
    @pl.when(layer == 0)
    def _():
        h_ref[...] = x_ref[...]

    # Aggregation: A' = A + (1+eps)I, native bf16 x bf16 MXU, f32 accumulation.
    agg = jnp.dot(a_ref[...], h_ref[...], preferred_element_type=jnp.float32)

    # Linear1 with BatchNorm(eval) pre-folded into W/b, then ReLU.
    t = jnp.dot(agg.astype(jnp.bfloat16), w1_ref[...],
                preferred_element_type=jnp.float32) + b1_ref[...]
    t = jnp.maximum(t, 0.0)
    # Linear2, then the outer .relu() from `conv(x, edge_index).relu()`.
    t = jnp.dot(t.astype(jnp.bfloat16), w2_ref[...],
                preferred_element_type=jnp.float32) + b2_ref[...]
    h_new = jnp.maximum(t, 0.0).astype(jnp.bfloat16)
    h_ref[...] = h_new

    # Fused head on the final layer:
    # global_mean_pool (P @ h) -> lin1 -> relu -> dropout(eval=id) -> lin2.
    @pl.when(layer == last)
    def _():
        pooled = jnp.dot(p_ref[...], h_new, preferred_element_type=jnp.float32)
        r = jnp.dot(pooled.astype(jnp.bfloat16), lw1_ref[...],
                    preferred_element_type=jnp.float32) + lb1_ref[...]
        r = jnp.maximum(r, 0.0).astype(jnp.bfloat16)
        o_ref[...] = jnp.dot(r, lw2_ref[...],
                             preferred_element_type=jnp.float32) + lb2_ref[...]


# ---------------------------------------------------------------------------
# Wrapper: host-side folding / padding / stacking + the single pallas_call
# ---------------------------------------------------------------------------
def gin_forward(params, x, edge_index, batch, num_graphs, *, eps=0.0):
    N, C = x.shape
    H = params["convs"][0]["w2"].shape[1]
    OUT = params["lin2_w"].shape[1]
    L = len(params["convs"])

    LANE = 128
    Dp = max(_round_up(C, LANE), _round_up(H, LANE))   # padded channel width
    Op = _round_up(OUT, LANE)                          # padded output width
    Np = _round_up(N, 16)                              # bf16 sublane packing
    Gp = _round_up(num_graphs, 8)                      # padded graph count
    f32, bf16 = jnp.float32, jnp.bfloat16

    def pad2(a, r, c, dtype):
        return jnp.pad(a, ((0, r - a.shape[0]), (0, c - a.shape[1]))).astype(dtype)

    # Adjacency with the (1+eps) self-term folded in; small-integer edge
    # multiplicities (and eps=0) are exact in bf16.
    src, dst = edge_index[0], edge_index[1]
    A = jnp.zeros((Np, Np), f32).at[dst, src].add(1.0)
    A = (A + (1.0 + eps) * jnp.eye(Np, dtype=f32)).astype(bf16)

    xp = pad2(x.astype(f32), Np, Dp, bf16)

    # Per-layer weights: fold BN into Linear1, zero-pad, stack along layer axis.
    w1s, b1s, w2s, b2s = [], [], [], []
    for lyr in params["convs"]:
        w1f = lyr["w1"] * lyr["scale"]                    # BN scale folded
        b1f = lyr["b1"] * lyr["scale"] + lyr["shift"]     # BN shift folded
        w1s.append(pad2(w1f, Dp, Dp, bf16))
        b1s.append(pad2(b1f, 1, Dp, f32))
        w2s.append(pad2(lyr["w2"], Dp, Dp, bf16))
        b2s.append(pad2(lyr["b2"], 1, Dp, f32))
    w1s = jnp.stack(w1s)   # [L, Dp, Dp] bf16
    b1s = jnp.stack(b1s)   # [L, 1, Dp]  f32
    w2s = jnp.stack(w2s)   # [L, Dp, Dp] bf16
    b2s = jnp.stack(b2s)   # [L, 1, Dp]  f32

    # global_mean_pool as a matmul: P[g, n] = 1/|graph g| if batch[n] == g.
    one_hot = jax.nn.one_hot(batch, num_graphs, dtype=f32)       # [N, G]
    counts = jnp.maximum(one_hot.sum(axis=0), 1.0)
    P = pad2(one_hot.T / counts[:, None], Gp, Np, bf16)          # [Gp, Np]

    lw1 = pad2(params["lin1_w"], Dp, Dp, bf16)
    lb1 = pad2(params["lin1_b"], 1, Dp, f32)
    lw2 = pad2(params["lin2_w"], Dp, Op, bf16)
    lb2 = pad2(params["lin2_b"], 1, Op, f32)

    args = (A, xp, w1s, b1s, w2s, b2s, P, lw1, lb1, lw2, lb2)

    # ---- VMEM budget & limit (conservative: 2 buffers everywhere) ----------
    BF, F4 = 2, 4
    fixed_buf = (Np * Np * BF + Np * Dp * BF + Gp * Np * BF
                 + Dp * Dp * BF + Dp * F4 + Dp * Op * BF + Op * F4)
    streamed_buf = 2 * (Dp * Dp * BF + Dp * F4 + Dp * Dp * BF + Dp * F4)
    out_buf = 2 * Gp * Op * F4
    scratch_buf = Np * Dp * BF
    required = 2 * fixed_buf + streamed_buf + out_buf + scratch_buf

    phys_vmem = 128 << 20
    try:
        phys_vmem = int(pltpu.get_tpu_info().vmem_capacity_bytes)
    except Exception:
        pass
    budget = (phys_vmem * 3) // 4
    if required > budget:
        raise ValueError(
            f"dense-A GIN kernel needs ~{required >> 20} MiB VMEM, over the "
            f"{budget >> 20} MiB budget for this TPU generation; use a "
            "row-tiled / CSR aggregation path (see TODO at top of file).")
    vmem_limit = int(min(budget, max(32 << 20, 2 * required)))

    flops = (L * (2 * Np * Np * Dp + 2 * Np * Dp * Dp + 2 * Np * Dp * Dp)
             + 2 * Gp * Np * Dp + 2 * Gp * Dp * Dp + 2 * Gp * Dp * Op)
    bytes_accessed = (sum(int(a.size) * a.dtype.itemsize for a in args)
                      + Gp * Op * 4)

    fixed = lambda l: (0, 0)          # resident across the layer axis
    per_layer = lambda l: (l, 0, 0)   # stream this layer's weights

    def build(single_buffer_fixed):
        kw = {"pipeline_mode": pl.Buffered(1)} if single_buffer_fixed else {}
        in_specs = [
            pl.BlockSpec((Np, Np), fixed, **kw),               # A' (bf16)
            pl.BlockSpec((Np, Dp), fixed, **kw),               # x (padded, bf16)
            pl.BlockSpec((pl.Squeezed(), Dp, Dp), per_layer),  # W1 (BN folded)
            pl.BlockSpec((pl.Squeezed(), 1, Dp), per_layer),   # b1 (BN folded)
            pl.BlockSpec((pl.Squeezed(), Dp, Dp), per_layer),  # W2
            pl.BlockSpec((pl.Squeezed(), 1, Dp), per_layer),   # b2
            pl.BlockSpec((Gp, Np), fixed, **kw),               # mean-pool matrix
            pl.BlockSpec((Dp, Dp), fixed, **kw),               # lin1 W
            pl.BlockSpec((1, Dp), fixed, **kw),                # lin1 b
            pl.BlockSpec((Dp, Op), fixed, **kw),               # lin2 W
            pl.BlockSpec((1, Op), fixed, **kw),                # lin2 b
        ]
        return pl.pallas_call(
            _gin_fused_kernel,
            out_shape=jax.ShapeDtypeStruct((Gp, Op), f32),
            grid=(L,),
            in_specs=in_specs,
            out_specs=pl.BlockSpec((Gp, Op), fixed),
            scratch_shapes=[pltpu.VMEM((Np, Dp), bf16)],   # resident activation
            compiler_params=pltpu.CompilerParams(
                dimension_semantics=("arbitrary",),        # layers sequential
                vmem_limit_bytes=vmem_limit),
            cost_estimate=pl.CostEstimate(flops=flops, transcendentals=0,
                                          bytes_accessed=bytes_accessed),
        )

    try:
        out = build(True)(*args)
    except Exception:
        # pipeline_mode=pl.Buffered(1) may be unsupported in this jax version;
        # fall back to default double-buffered fixed blocks (same semantics).
        out = build(False)(*args)

    return out[:num_graphs, :OUT]


# ---------------------------------------------------------------------------
# Parameter construction (deterministic, synthetic)
# ---------------------------------------------------------------------------
def init_gin_params(key, in_channels, hidden_channels, out_channels, num_layers):
    params = {"convs": []}
    c_in = in_channels
    for _ in range(num_layers):
        key, k1, k2, k3, k4, k5, k6 = jax.random.split(key, 7)
        w1 = jax.random.normal(k1, (c_in, hidden_channels), jnp.float32) * 0.1
        b1 = jax.random.normal(k2, (1, hidden_channels), jnp.float32) * 0.1
        w2 = jax.random.normal(k3, (hidden_channels, hidden_channels), jnp.float32) * 0.1
        b2 = jax.random.normal(k4, (1, hidden_channels), jnp.float32) * 0.1
        gamma = 1.0 + 0.1 * jax.random.normal(k5, (1, hidden_channels), jnp.float32)
        beta = 0.1 * jax.random.normal(k6, (1, hidden_channels), jnp.float32)
        # BatchNorm1d eval mode with fresh running stats: mean=0, var=1, eps=1e-5
        run_mean = jnp.zeros((1, hidden_channels), jnp.float32)
        run_var = jnp.ones((1, hidden_channels), jnp.float32)
        scale = gamma / jnp.sqrt(run_var + 1e-5)
        shift = beta - run_mean * scale
        params["convs"].append(dict(w1=w1, b1=b1, scale=scale, shift=shift,
                                    w2=w2, b2=b2))
        c_in = hidden_channels
    key, k1, k2, k3, k4 = jax.random.split(key, 5)
    params["lin1_w"] = jax.random.normal(k1, (hidden_channels, hidden_channels),
                                         jnp.float32) * 0.1
    params["lin1_b"] = jax.random.normal(k2, (1, hidden_channels), jnp.float32) * 0.1
    params["lin2_w"] = jax.random.normal(k3, (hidden_channels, out_channels),
                                         jnp.float32) * 0.1
    params["lin2_b"] = jax.random.normal(k4, (1, out_channels), jnp.float32) * 0.1
    return params


# ---------------------------------------------------------------------------
# Pure-JAX f32 reference (PyTorch eval-mode semantics, un-folded, un-padded)
# ---------------------------------------------------------------------------
def gin_forward_ref(params, x, edge_index, batch, num_graphs):
    N = x.shape[0]
    A = jnp.zeros((N, N), jnp.float32).at[edge_index[1], edge_index[0]].add(1.0)
    h = x.astype(jnp.float32)
    for layer in params["convs"]:
        t = h + A @ h                       # eps = 0.0 (PyG default)
        t = t @ layer["w1"] + layer["b1"]
        t = t * layer["scale"] + layer["shift"]
        t = jnp.maximum(t, 0.0)
        t = t @ layer["w2"] + layer["b2"]
        h = jnp.maximum(t, 0.0)
    one_hot = jax.nn.one_hot(batch, num_graphs, dtype=jnp.float32)
    counts = jnp.maximum(one_hot.sum(axis=0), 1.0)
    pooled = (one_hot.T / counts[:, None]) @ h
    t = jnp.maximum(pooled @ params["lin1_w"] + params["lin1_b"], 0.0)
    return t @ params["lin2_w"] + params["lin2_b"]


if __name__ == "__main__":
    # Small, GNN-shaped example: 16 nodes, 4 input feats, hidden 32, 4 classes,
    # 2 GIN layers, 2 graphs in the batch.
    IN_C, HID, OUT_C, LAYERS = 4, 32, 4, 2
    N, G = 16, 2

    key = jax.random.PRNGKey(0)
    key, kx, ke = jax.random.split(key, 3)

    x = jax.random.normal(kx, (N, IN_C), jnp.float32)
    E = 40
    src = jax.random.randint(ke, (E,), 0, N)
    dst = jax.random.randint(jax.random.fold_in(ke, 1), (E,), 0, N)
    edge_index = jnp.stack([src, dst], axis=0).astype(jnp.int32)   # [2, E]
    batch = jnp.concatenate([jnp.zeros((N // 2,), jnp.int32),
                             jnp.ones((N - N // 2,), jnp.int32)])  # [N]

    params = init_gin_params(key, IN_C, HID, OUT_C, LAYERS)

    out = gin_forward(params, x, edge_index, batch, G)
    out = jax.block_until_ready(out)

    ref = gin_forward_ref(params, x, edge_index, batch, G)
    assert out.shape == (G, OUT_C)
    # bf16 matmul operands (f32 accumulation) -> bf16-level tolerance vs f32 ref
    assert jnp.allclose(out, ref, atol=2e-2, rtol=2e-2), (out, ref)

    print("KERNEL_OK")
</pallas_src>

<mosaic_0001>
module attributes {stable_mosaic.version = 11 : i64} {
  func.func @_gin_fused_kernel(%arg0: i32, %arg1: memref<16x16xbf16, #tpu.memory_space<vmem>>, %arg2: memref<16x128xbf16, #tpu.memory_space<vmem>>, %arg3: memref<1x128x128xbf16, #tpu.memory_space<vmem>>, %arg4: memref<1x1x128xf32, #tpu.memory_space<vmem>>, %arg5: memref<1x128x128xbf16, #tpu.memory_space<vmem>>, %arg6: memref<1x1x128xf32, #tpu.memory_space<vmem>>, %arg7: memref<8x16xbf16, #tpu.memory_space<vmem>>, %arg8: memref<128x128xbf16, #tpu.memory_space<vmem>>, %arg9: memref<1x128xf32, #tpu.memory_space<vmem>>, %arg10: memref<128x128xbf16, #tpu.memory_space<vmem>>, %arg11: memref<1x128xf32, #tpu.memory_space<vmem>>, %arg12: memref<8x128xf32, #tpu.memory_space<vmem>>, %arg13: memref<16x128xbf16, #tpu.memory_space<vmem>>) attributes {dimension_semantics = [#tpu.dimension_semantics<arbitrary>], iteration_bounds = array<i64: 2>, scalar_prefetch = 0 : i64, scratch_operands = 1 : i64, tpu.core_type = #tpu.core_type<tc>, window_params = [{pipeline_mode = #tpu.pipeline_mode<synchronous>, transform_indices = @transform_0, window_bounds = array<i64: 16, 16>}, {pipeline_mode = #tpu.pipeline_mode<synchronous>, transform_indices = @transform_1, window_bounds = array<i64: 16, 128>}, {transform_indices = @transform_2, window_bounds = array<i64: 1, 128, 128>}, {transform_indices = @transform_3, window_bounds = array<i64: 1, 1, 128>}, {transform_indices = @transform_4, window_bounds = array<i64: 1, 128, 128>}, {transform_indices = @transform_5, window_bounds = array<i64: 1, 1, 128>}, {pipeline_mode = #tpu.pipeline_mode<synchronous>, transform_indices = @transform_6, window_bounds = array<i64: 8, 16>}, {pipeline_mode = #tpu.pipeline_mode<synchronous>, transform_indices = @transform_7, window_bounds = array<i64: 128, 128>}, {pipeline_mode = #tpu.pipeline_mode<synchronous>, transform_indices = @transform_8, window_bounds = array<i64: 1, 128>}, {pipeline_mode = #tpu.pipeline_mode<synchronous>, transform_indices = @transform_9, window_bounds = array<i64: 128, 128>}, {pipeline_mode = #tpu.pipeline_mode<synchronous>, transform_indices = @transform_10, window_bounds = array<i64: 1, 128>}, {pipeline_mode = #tpu.pipeline_mode<synchronous>, transform_indices = @transform_11, window_bounds = array<i64: 8, 128>}]} {
    %c0_i32 = arith.constant 0 : i32
    %0 = arith.cmpi eq, %arg0, %c0_i32 : i32
    %1 = arith.extui %0 : i1 to i32
    %c0_i32_0 = arith.constant 0 : i32
    %2 = arith.cmpi ne, %1, %c0_i32_0 : i32
    scf.if %2 {
      %c0_23 = arith.constant 0 : index
      %c0_24 = arith.constant 0 : index
      %31 = vector.load %arg2[%c0_23, %c0_24] : memref<16x128xbf16, #tpu.memory_space<vmem>>, vector<16x128xbf16>
      %c0_25 = arith.constant 0 : index
      %c0_26 = arith.constant 0 : index
      %32 = vector.load %arg13[%c0_25, %c0_26] : memref<16x128xbf16, #tpu.memory_space<vmem>>, vector<16x128xbf16>
      tpu.vector_store %arg13[%c0_25, %c0_26], %31 {strides = array<i32>} : memref<16x128xbf16, #tpu.memory_space<vmem>>, vector<16x128xbf16>,
    } else {
    }
    %c0 = arith.constant 0 : index
    %c0_1 = arith.constant 0 : index
    %3 = vector.load %arg1[%c0, %c0_1] : memref<16x16xbf16, #tpu.memory_space<vmem>>, vector<16x16xbf16>
    %c0_2 = arith.constant 0 : index
    %c0_3 = arith.constant 0 : index
    %4 = vector.load %arg13[%c0_2, %c0_3] : memref<16x128xbf16, #tpu.memory_space<vmem>>, vector<16x128xbf16>
    %cst = arith.constant dense<0.000000e+00> : vector<16x128xf32>
    %5 = tpu.matmul %3, %4, %cst {dimension_numbers = #tpu.dot_dimension_numbers<[1], [0], [0], [1], [0, 0, 1, 1], [], []>} : vector<16x16xbf16>, vector<16x128xbf16>, vector<16x128xf32> -> vector<16x128xf32>
    %6 = arith.truncf %5 : vector<16x128xf32> to vector<16x128xbf16>
    %c0_4 = arith.constant 0 : index
    %c0_5 = arith.constant 0 : index
    %c0_6 = arith.constant 0 : index
    %7 = vector.load %arg3[%c0_4, %c0_5, %c0_6] : memref<1x128x128xbf16, #tpu.memory_space<vmem>>, vector<1x128x128xbf16>
    %8 = vector.shape_cast %7 : vector<1x128x128xbf16> to vector<128x128xbf16>
    %cst_7 = arith.constant dense<0.000000e+00> : vector<16x128xf32>
    %9 = tpu.matmul %6, %8, %cst_7 {dimension_numbers = #tpu.dot_dimension_numbers<[1], [0], [0], [1], [0, 0, 1, 1], [], []>} : vector<16x128xbf16>, vector<128x128xbf16>, vector<16x128xf32> -> vector<16x128xf32>
    %c0_8 = arith.constant 0 : index
    %c0_9 = arith.constant 0 : index
    %c0_10 = arith.constant 0 : index
    %10 = vector.load %arg4[%c0_8, %c0_9, %c0_10] : memref<1x1x128xf32, #tpu.memory_space<vmem>>, vector<1x1x128xf32>
    %11 = vector.shape_cast %10 : vector<1x1x128xf32> to vector<1x128xf32>
    %12 = vector.broadcast %11 : vector<1x128xf32> to vector<16x128xf32>
    %13 = arith.addf %9, %12 : vector<16x128xf32>
    %cst_11 = arith.constant 0.000000e+00 : f32
    %14 = vector.broadcast %cst_11 : f32 to vector<16x128xf32>
    %15 = arith.maximumf %13, %14 : vector<16x128xf32>
    %16 = arith.truncf %15 : vector<16x128xf32> to vector<16x128xbf16>
    %c0_12 = arith.constant 0 : index
    %c0_13 = arith.constant 0 : index
    %c0_14 = arith.constant 0 : index
    %17 = vector.load %arg5[%c0_12, %c0_13, %c0_14] : memref<1x128x128xbf16, #tpu.memory_space<vmem>>, vector<1x128x128xbf16>
    %18 = vector.shape_cast %17 : vector<1x128x128xbf16> to vector<128x128xbf16>
    %cst_15 = arith.constant dense<0.000000e+00> : vector<16x128xf32>
    %19 = tpu.matmul %16, %18, %cst_15 {dimension_numbers = #tpu.dot_dimension_numbers<[1], [0], [0], [1], [0, 0, 1, 1], [], []>} : vector<16x128xbf16>, vector<128x128xbf16>, vector<16x128xf32> -> vector<16x128xf32>
    %c0_16 = arith.constant 0 : index
    %c0_17 = arith.constant 0 : index
    %c0_18 = arith.constant 0 : index
    %20 = vector.load %arg6[%c0_16, %c0_17, %c0_18] : memref<1x1x128xf32, #tpu.memory_space<vmem>>, vector<1x1x128xf32>
    %21 = vector.shape_cast %20 : vector<1x1x128xf32> to vector<1x128xf32>
    %22 = vector.broadcast %21 : vector<1x128xf32> to vector<16x128xf32>
    %23 = arith.addf %19, %22 : vector<16x128xf32>
    %cst_19 = arith.constant 0.000000e+00 : f32
    %24 = vector.broadcast %cst_19 : f32 to vector<16x128xf32>
    %25 = arith.maximumf %23, %24 : vector<16x128xf32>
    %26 = arith.truncf %25 : vector<16x128xf32> to vector<16x128xbf16>
    %c0_20 = arith.constant 0 : index
    %c0_21 = arith.constant 0 : index
    %27 = vector.load %arg13[%c0_20, %c0_21] : memref<16x128xbf16, #tpu.memory_space<vmem>>, vector<16x128xbf16>
    tpu.vector_store %arg13[%c0_20, %c0_21], %26 {strides = array<i32>} : memref<16x128xbf16, #tpu.memory_space<vmem>>, vector<16x128xbf16>,
    %c1_i32 = arith.constant 1 : i32
    %28 = arith.cmpi eq, %arg0, %c1_i32 : i32
    %29 = arith.extui %28 : i1 to i32
    %c0_i32_22 = arith.constant 0 : i32
    %30 = arith.cmpi ne, %29, %c0_i32_22 : i32
    scf.if %30 {
      %c0_23 = arith.constant 0 : index
      %c0_24 = arith.constant 0 : index
      %31 = vector.load %arg7[%c0_23, %c0_24] : memref<8x16xbf16, #tpu.memory_space<vmem>>, vector<8x16xbf16>
      %cst_25 = arith.constant dense<0.000000e+00> : vector<8x128xf32>
      %32 = tpu.matmul %31, %26, %cst_25 {dimension_numbers = #tpu.dot_dimension_numbers<[1], [0], [0], [1], [0, 0, 1, 1], [], []>} : vector<8x16xbf16>, vector<16x128xbf16>, vector<8x128xf32> -> vector<8x128xf32>
      %33 = arith.truncf %32 : vector<8x128xf32> to vector<8x128xbf16>
      %c0_26 = arith.constant 0 : index
      %c0_27 = arith.constant 0 : index
      %34 = vector.load %arg8[%c0_26, %c0_27] : memref<128x128xbf16, #tpu.memory_space<vmem>>, vector<128x128xbf16>
      %cst_28 = arith.constant dense<0.000000e+00> : vector<8x128xf32>
      %35 = tpu.matmul %33, %34, %cst_28 {dimension_numbers = #tpu.dot_dimension_numbers<[1], [0], [0], [1], [0, 0, 1, 1], [], []>} : vector<8x128xbf16>, vector<128x128xbf16>, vector<8x128xf32> -> vector<8x128xf32>
      %c0_29 = arith.constant 0 : index
      %c0_30 = arith.constant 0 : index
      %36 = vector.load %arg9[%c0_29, %c0_30] : memref<1x128xf32, #tpu.memory_space<vmem>>, vector<1x128xf32>
      %37 = vector.broadcast %36 : vector<1x128xf32> to vector<8x128xf32>
      %38 = arith.addf %35, %37 : vector<8x128xf32>
      %cst_31 = arith.constant 0.000000e+00 : f32
      %39 = vector.broadcast %cst_31 : f32 to vector<8x128xf32>
      %40 = arith.maximumf %38, %39 : vector<8x128xf32>
      %41 = arith.truncf %40 : vector<8x128xf32> to vector<8x128xbf16>
      %c0_32 = arith.constant 0 : index
      %c0_33 = arith.constant 0 : index
      %42 = vector.load %arg10[%c0_32, %c0_33] : memref<128x128xbf16, #tpu.memory_space<vmem>>, vector<128x128xbf16>
      %cst_34 = arith.constant dense<0.000000e+00> : vector<8x128xf32>
      %43 = tpu.matmul %41, %42, %cst_34 {dimension_numbers = #tpu.dot_dimension_numbers<[1], [0], [0], [1], [0, 0, 1, 1], [], []>} : vector<8x128xbf16>, vector<128x128xbf16>, vector<8x128xf32> -> vector<8x128xf32>
      %c0_35 = arith.constant 0 : index
      %c0_36 = arith.constant 0 : index
      %44 = vector.load %arg11[%c0_35, %c0_36] : memref<1x128xf32, #tpu.memory_space<vmem>>, vector<1x128xf32>
      %45 = vector.broadcast %44 : vector<1x128xf32> to vector<8x128xf32>
      %46 = arith.addf %43, %45 : vector<8x128xf32>
      %c0_37 = arith.constant 0 : index
      %c0_38 = arith.constant 0 : index
      %47 = vector.load %arg12[%c0_37, %c0_38] : memref<8x128xf32, #tpu.memory_space<vmem>>, vector<8x128xf32>
      tpu.vector_store %arg12[%c0_37, %c0_38], %46 {strides = array<i32>} : memref<8x128xf32, #tpu.memory_space<vmem>>, vector<8x128xf32>,
    } else {
    }
    return
  }
  func.func @transform_0(%arg0: i32) -> (i32, i32) {
    %c0_i32 = arith.constant 0 : i32
    %c0_i32_0 = arith.constant 0 : i32
    %c0_i32_1 = arith.constant 0 : i32
    return %c0_i32, %c0_i32_0 : i32, i32
  }
  func.func @transform_1(%arg0: i32) -> (i32, i32) {
    %c0_i32 = arith.constant 0 : i32
    %c0_i32_0 = arith.constant 0 : i32
    %c0_i32_1 = arith.constant 0 : i32
    return %c0_i32, %c0_i32_0 : i32, i32
  }
  func.func @transform_2(%arg0: i32) -> (i32, i32, i32) {
    %c0_i32 = arith.constant 0 : i32
    %c0_i32_0 = arith.constant 0 : i32
    %c0_i32_1 = arith.constant 0 : i32
    return %arg0, %c0_i32, %c0_i32_0 : i32, i32, i32
  }
  func.func @transform_3(%arg0: i32) -> (i32, i32, i32) {
    %c0_i32 = arith.constant 0 : i32
    %c0_i32_0 = arith.constant 0 : i32
    %c0_i32_1 = arith.constant 0 : i32
    return %arg0, %c0_i32, %c0_i32_0 : i32, i32, i32
  }
  func.func @transform_4(%arg0: i32) -> (i32, i32, i32) {
    %c0_i32 = arith.constant 0 : i32
    %c0_i32_0 = arith.constant 0 : i32
    %c0_i32_1 = arith.constant 0 : i32
    return %arg0, %c0_i32, %c0_i32_0 : i32, i32, i32
  }
  func.func @transform_5(%arg0: i32) -> (i32, i32, i32) {
    %c0_i32 = arith.constant 0 : i32
    %c0_i32_0 = arith.constant 0 : i32
    %c0_i32_1 = arith.constant 0 : i32
    return %arg0, %c0_i32, %c0_i32_0 : i32, i32, i32
  }
  func.func @transform_6(%arg0: i32) -> (i32, i32) {
    %c0_i32 = arith.constant 0 : i32
    %c0_i32_0 = arith.constant 0 : i32
    %c0_i32_1 = arith.constant 0 : i32
    return %c0_i32, %c0_i32_0 : i32, i32
  }
  func.func @transform_7(%arg0: i32) -> (i32, i32) {
    %c0_i32 = arith.constant 0 : i32
    %c0_i32_0 = arith.constant 0 : i32
    %c0_i32_1 = arith.constant 0 : i32
    return %c0_i32, %c0_i32_0 : i32, i32
  }
  func.func @transform_8(%arg0: i32) -> (i32, i32) {
    %c0_i32 = arith.constant 0 : i32
    %c0_i32_0 = arith.constant 0 : i32
    %c0_i32_1 = arith.constant 0 : i32
    return %c0_i32, %c0_i32_0 : i32, i32
  }
  func.func @transform_9(%arg0: i32) -> (i32, i32) {
    %c0_i32 = arith.constant 0 : i32
    %c0_i32_0 = arith.constant 0 : i32
    %c0_i32_1 = arith.constant 0 : i32
    return %c0_i32, %c0_i32_0 : i32, i32
  }
  func.func @transform_10(%arg0: i32) -> (i32, i32) {
    %c0_i32 = arith.constant 0 : i32
    %c0_i32_0 = arith.constant 0 : i32
    %c0_i32_1 = arith.constant 0 : i32
    return %c0_i32, %c0_i32_0 : i32, i32
  }
  func.func @transform_11(%arg0: i32) -> (i32, i32) {
    %c0_i32 = arith.constant 0 : i32
    %c0_i32_0 = arith.constant 0 : i32
    %c0_i32_1 = arith.constant 0 : i32
    return %c0_i32, %c0_i32_0 : i32, i32
  }
}

module attributes {stable_mosaic.version = 11 : i64} {
  func.func @_gin_fused_kernel(%arg0: i32, %arg1: memref<16x16xbf16, #tpu.memory_space<vmem>>, %arg2: memref<16x128xbf16, #tpu.memory_space<vmem>>, %arg3: memref<1x128x128xbf16, #tpu.memory_space<vmem>>, %arg4: memref<1x1x128xf32, #tpu.memory_space<vmem>>, %arg5: memref<1x128x128xbf16, #tpu.memory_space<vmem>>, %arg6: memref<1x1x128xf32, #tpu.memory_space<vmem>>, %arg7: memref<8x16xbf16, #tpu.memory_space<vmem>>, %arg8: memref<128x128xbf16, #tpu.memory_space<vmem>>, %arg9: memref<1x128xf32, #tpu.memory_space<vmem>>, %arg10: memref<128x128xbf16, #tpu.memory_space<vmem>>, %arg11: memref<1x128xf32, #tpu.memory_space<vmem>>, %arg12: memref<8x128xf32, #tpu.memory_space<vmem>>, %arg13: memref<16x128xbf16, #tpu.memory_space<vmem>>) attributes {dimension_semantics = [#tpu.dimension_semantics<arbitrary>], iteration_bounds = array<i64: 2>, scalar_prefetch = 0 : i64, scratch_operands = 1 : i64, tpu.core_type = #tpu.core_type<tc>, window_params = [{pipeline_mode = #tpu.pipeline_mode<synchronous>, transform_indices = @transform_0, window_bounds = array<i64: 16, 16>}, {pipeline_mode = #tpu.pipeline_mode<synchronous>, transform_indices = @transform_1, window_bounds = array<i64: 16, 128>}, {transform_indices = @transform_2, window_bounds = array<i64: 1, 128, 128>}, {transform_indices = @transform_3, window_bounds = array<i64: 1, 1, 128>}, {transform_indices = @transform_4, window_bounds = array<i64: 1, 128, 128>}, {transform_indices = @transform_5, window_bounds = array<i64: 1, 1, 128>}, {pipeline_mode = #tpu.pipeline_mode<synchronous>, transform_indices = @transform_6, window_bounds = array<i64: 8, 16>}, {pipeline_mode = #tpu.pipeline_mode<synchronous>, transform_indices = @transform_7, window_bounds = array<i64: 128, 128>}, {pipeline_mode = #tpu.pipeline_mode<synchronous>, transform_indices = @transform_8, window_bounds = array<i64: 1, 128>}, {pipeline_mode = #tpu.pipeline_mode<synchronous>, transform_indices = @transform_9, window_bounds = array<i64: 128, 128>}, {pipeline_mode = #tpu.pipeline_mode<synchronous>, transform_indices = @transform_10, window_bounds = array<i64: 1, 128>}, {pipeline_mode = #tpu.pipeline_mode<synchronous>, transform_indices = @transform_11, window_bounds = array<i64: 8, 128>}]} {
    %c0_i32 = arith.constant 0 : i32
    %0 = arith.cmpi eq, %arg0, %c0_i32 : i32
    %1 = arith.extui %0 : i1 to i32
    %c0_i32_0 = arith.constant 0 : i32
    %2 = arith.cmpi ne, %1, %c0_i32_0 : i32
    scf.if %2 {
      %c0_23 = arith.constant 0 : index
      %c0_24 = arith.constant 0 : index
      %31 = vector.load %arg2[%c0_23, %c0_24] : memref<16x128xbf16, #tpu.memory_space<vmem>>, vector<16x128xbf16>
      %c0_25 = arith.constant 0 : index
      %c0_26 = arith.constant 0 : index
      %32 = vector.load %arg13[%c0_25, %c0_26] : memref<16x128xbf16, #tpu.memory_space<vmem>>, vector<16x128xbf16>
      tpu.vector_store %arg13[%c0_25, %c0_26], %31 {strides = array<i32>} : memref<16x128xbf16, #tpu.memory_space<vmem>>, vector<16x128xbf16>,
    } else {
    }
    %c0 = arith.constant 0 : index
    %c0_1 = arith.constant 0 : index
    %3 = vector.load %arg1[%c0, %c0_1] : memref<16x16xbf16, #tpu.memory_space<vmem>>, vector<16x16xbf16>
    %c0_2 = arith.constant 0 : index
    %c0_3 = arith.constant 0 : index
    %4 = vector.load %arg13[%c0_2, %c0_3] : memref<16x128xbf16, #tpu.memory_space<vmem>>, vector<16x128xbf16>
    %cst = arith.constant dense<0.000000e+00> : vector<16x128xf32>
    %5 = tpu.matmul %3, %4, %cst {dimension_numbers = #tpu.dot_dimension_numbers<[1], [0], [0], [1], [0, 0, 1, 1], [], []>} : vector<16x16xbf16>, vector<16x128xbf16>, vector<16x128xf32> -> vector<16x128xf32>
    %6 = arith.truncf %5 : vector<16x128xf32> to vector<16x128xbf16>
    %c0_4 = arith.constant 0 : index
    %c0_5 = arith.constant 0 : index
    %c0_6 = arith.constant 0 : index
    %7 = vector.load %arg3[%c0_4, %c0_5, %c0_6] : memref<1x128x128xbf16, #tpu.memory_space<vmem>>, vector<1x128x128xbf16>
    %8 = vector.shape_cast %7 : vector<1x128x128xbf16> to vector<128x128xbf16>
    %cst_7 = arith.constant dense<0.000000e+00> : vector<16x128xf32>
    %9 = tpu.matmul %6, %8, %cst_7 {dimension_numbers = #tpu.dot_dimension_numbers<[1], [0], [0], [1], [0, 0, 1, 1], [], []>} : vector<16x128xbf16>, vector<128x128xbf16>, vector<16x128xf32> -> vector<16x128xf32>
    %c0_8 = arith.constant 0 : index
    %c0_9 = arith.constant 0 : index
    %c0_10 = arith.constant 0 : index
    %10 = vector.load %arg4[%c0_8, %c0_9, %c0_10] : memref<1x1x128xf32, #tpu.memory_space<vmem>>, vector<1x1x128xf32>
    %11 = vector.shape_cast %10 : vector<1x1x128xf32> to vector<1x128xf32>
    %12 = vector.broadcast %11 : vector<1x128xf32> to vector<16x128xf32>
    %13 = arith.addf %9, %12 : vector<16x128xf32>
    %cst_11 = arith.constant 0.000000e+00 : f32
    %14 = vector.broadcast %cst_11 : f32 to vector<16x128xf32>
    %15 = arith.maximumf %13, %14 : vector<16x128xf32>
    %16 = arith.truncf %15 : vector<16x128xf32> to vector<16x128xbf16>
    %c0_12 = arith.constant 0 : index
    %c0_13 = arith.constant 0 : index
    %c0_14 = arith.constant 0 : index
    %17 = vector.load %arg5[%c0_12, %c0_13, %c0_14] : memref<1x128x128xbf16, #tpu.memory_space<vmem>>, vector<1x128x128xbf16>
    %18 = vector.shape_cast %17 : vector<1x128x128xbf16> to vector<128x128xbf16>
    %cst_15 = arith.constant dense<0.000000e+00> : vector<16x128xf32>
    %19 = tpu.matmul %16, %18, %cst_15 {dimension_numbers = #tpu.dot_dimension_numbers<[1], [0], [0], [1], [0, 0, 1, 1], [], []>} : vector<16x128xbf16>, vector<128x128xbf16>, vector<16x128xf32> -> vector<16x128xf32>
    %c0_16 = arith.constant 0 : index
    %c0_17 = arith.constant 0 : index
    %c0_18 = arith.constant 0 : index
    %20 = vector.load %arg6[%c0_16, %c0_17, %c0_18] : memref<1x1x128xf32, #tpu.memory_space<vmem>>, vector<1x1x128xf32>
    %21 = vector.shape_cast %20 : vector<1x1x128xf32> to vector<1x128xf32>
    %22 = vector.broadcast %21 : vector<1x128xf32> to vector<16x128xf32>
    %23 = arith.addf %19, %22 : vector<16x128xf32>
    %cst_19 = arith.constant 0.000000e+00 : f32
    %24 = vector.broadcast %cst_19 : f32 to vector<16x128xf32>
    %25 = arith.maximumf %23, %24 : vector<16x128xf32>
    %26 = arith.truncf %25 : vector<16x128xf32> to vector<16x128xbf16>
    %c0_20 = arith.constant 0 : index
    %c0_21 = arith.constant 0 : index
    %27 = vector.load %arg13[%c0_20, %c0_21] : memref<16x128xbf16, #tpu.memory_space<vmem>>, vector<16x128xbf16>
    tpu.vector_store %arg13[%c0_20, %c0_21], %26 {strides = array<i32>} : memref<16x128xbf16, #tpu.memory_space<vmem>>, vector<16x128xbf16>,
    %c1_i32 = arith.constant 1 : i32
    %28 = arith.cmpi eq, %arg0, %c1_i32 : i32
    %29 = arith.extui %28 : i1 to i32
    %c0_i32_22 = arith.constant 0 : i32
    %30 = arith.cmpi ne, %29, %c0_i32_22 : i32
    scf.if %30 {
      %c0_23 = arith.constant 0 : index
      %c0_24 = arith.constant 0 : index
      %31 = vector.load %arg7[%c0_23, %c0_24] : memref<8x16xbf16, #tpu.memory_space<vmem>>, vector<8x16xbf16>
      %cst_25 = arith.constant dense<0.000000e+00> : vector<8x128xf32>
      %32 = tpu.matmul %31, %26, %cst_25 {dimension_numbers = #tpu.dot_dimension_numbers<[1], [0], [0], [1], [0, 0, 1, 1], [], []>} : vector<8x16xbf16>, vector<16x128xbf16>, vector<8x128xf32> -> vector<8x128xf32>
      %33 = arith.truncf %32 : vector<8x128xf32> to vector<8x128xbf16>
      %c0_26 = arith.constant 0 : index
      %c0_27 = arith.constant 0 : index
      %34 = vector.load %arg8[%c0_26, %c0_27] : memref<128x128xbf16, #tpu.memory_space<vmem>>, vector<128x128xbf16>
      %cst_28 = arith.constant dense<0.000000e+00> : vector<8x128xf32>
      %35 = tpu.matmul %33, %34, %cst_28 {dimension_numbers = #tpu.dot_dimension_numbers<[1], [0], [0], [1], [0, 0, 1, 1], [], []>} : vector<8x128xbf16>, vector<128x128xbf16>, vector<8x128xf32> -> vector<8x128xf32>
      %c0_29 = arith.constant 0 : index
      %c0_30 = arith.constant 0 : index
      %36 = vector.load %arg9[%c0_29, %c0_30] : memref<1x128xf32, #tpu.memory_space<vmem>>, vector<1x128xf32>
      %37 = vector.broadcast %36 : vector<1x128xf32> to vector<8x128xf32>
      %38 = arith.addf %35, %37 : vector<8x128xf32>
      %cst_31 = arith.constant 0.000000e+00 : f32
      %39 = vector.broadcast %cst_31 : f32 to vector<8x128xf32>
      %40 = arith.maximumf %38, %39 : vector<8x128xf32>
      %41 = arith.truncf %40 : vector<8x128xf32> to vector<8x128xbf16>
      %c0_32 = arith.constant 0 : index
      %c0_33 = arith.constant 0 : index
      %42 = vector.load %arg10[%c0_32, %c0_33] : memref<128x128xbf16, #tpu.memory_space<vmem>>, vector<128x128xbf16>
      %cst_34 = arith.constant dense<0.000000e+00> : vector<8x128xf32>
      %43 = tpu.matmul %41, %42, %cst_34 {dimension_numbers = #tpu.dot_dimension_numbers<[1], [0], [0], [1], [0, 0, 1, 1], [], []>} : vector<8x128xbf16>, vector<128x128xbf16>, vector<8x128xf32> -> vector<8x128xf32>
      %c0_35 = arith.constant 0 : index
      %c0_36 = arith.constant 0 : index
      %44 = vector.load %arg11[%c0_35, %c0_36] : memref<1x128xf32, #tpu.memory_space<vmem>>, vector<1x128xf32>
      %45 = vector.broadcast %44 : vector<1x128xf32> to vector<8x128xf32>
      %46 = arith.addf %43, %45 : vector<8x128xf32>
      %c0_37 = arith.constant 0 : index
      %c0_38 = arith.constant 0 : index
      %47 = vector.load %arg12[%c0_37, %c0_38] : memref<8x128xf32, #tpu.memory_space<vmem>>, vector<8x128xf32>
      tpu.vector_store %arg12[%c0_37, %c0_38], %46 {strides = array<i32>} : memref<8x128xf32, #tpu.memory_space<vmem>>, vector<8x128xf32>,
    } else {
    }
    return
  }
  func.func @transform_0(%arg0: i32) -> (i32, i32) {
    %c0_i32 = arith.constant 0 : i32
    %c0_i32_0 = arith.constant 0 : i32
    %c0_i32_1 = arith.constant 0 : i32
    return %c0_i32, %c0_i32_0 : i32, i32
  }
  func.func @transform_1(%arg0: i32) -> (i32, i32) {
    %c0_i32 = arith.constant 0 : i32
    %c0_i32_0 = arith.constant 0 : i32
    %c0_i32_1 = arith.constant 0 : i32
    return %c0_i32, %c0_i32_0 : i32, i32
  }
  func.func @transform_2(%arg0: i32) -> (i32, i32, i32) {
    %c0_i32 = arith.constant 0 : i32
    %c0_i32_0 = arith.constant 0 : i32
    %c0_i32_1 = arith.constant 0 : i32
    return %arg0, %c0_i32, %c0_i32_0 : i32, i32, i32
  }
  func.func @transform_3(%arg0: i32) -> (i32, i32, i32) {
    %c0_i32 = arith.constant 0 : i32
    %c0_i32_0 = arith.constant 0 : i32
    %c0_i32_1 = arith.constant 0 : i32
    return %arg0, %c0_i32, %c0_i32_0 : i32, i32, i32
  }
  func.func @transform_4(%arg0: i32) -> (i32, i32, i32) {
    %c0_i32 = arith.constant 0 : i32
    %c0_i32_0 = arith.constant 0 : i32
    %c0_i32_1 = arith.constant 0 : i32
    return %arg0, %c0_i32, %c0_i32_0 : i32, i32, i32
  }
  func.func @transform_5(%arg0: i32) -> (i32, i32, i32) {
    %c0_i32 = arith.constant 0 : i32
    %c0_i32_0 = arith.constant 0 : i32
    %c0_i32_1 = arith.constant 0 : i32
    return %arg0, %c0_i32, %c0_i32_0 : i32, i32, i32
  }
  func.func @transform_6(%arg0: i32) -> (i32, i32) {
    %c0_i32 = arith.constant 0 : i32
    %c0_i32_0 = arith.constant 0 : i32
    %c0_i32_1 = arith.constant 0 : i32
    return %c0_i32, %c0_i32_0 : i32, i32
  }
  func.func @transform_7(%arg0: i32) -> (i32, i32) {
    %c0_i32 = arith.constant 0 : i32
    %c0_i32_0 = arith.constant 0 : i32
    %c0_i32_1 = arith.constant 0 : i32
    return %c0_i32, %c0_i32_0 : i32, i32
  }
  func.func @transform_8(%arg0: i32) -> (i32, i32) {
    %c0_i32 = arith.constant 0 : i32
    %c0_i32_0 = arith.constant 0 : i32
    %c0_i32_1 = arith.constant 0 : i32
    return %c0_i32, %c0_i32_0 : i32, i32
  }
  func.func @transform_9(%arg0: i32) -> (i32, i32) {
    %c0_i32 = arith.constant 0 : i32
    %c0_i32_0 = arith.constant 0 : i32
    %c0_i32_1 = arith.constant 0 : i32
    return %c0_i32, %c0_i32_0 : i32, i32
  }
  func.func @transform_10(%arg0: i32) -> (i32, i32) {
    %c0_i32 = arith.constant 0 : i32
    %c0_i32_0 = arith.constant 0 : i32
    %c0_i32_1 = arith.constant 0 : i32
    return %c0_i32, %c0_i32_0 : i32, i32
  }
  func.func @transform_11(%arg0: i32) -> (i32, i32) {
    %c0_i32 = arith.constant 0 : i32
    %c0_i32_0 = arith.constant 0 : i32
    %c0_i32_1 = arith.constant 0 : i32
    return %c0_i32, %c0_i32_0 : i32, i32
  }
}

</mosaic_0001>

<llo_original>
// kernel: tpu_custom_call.1
$region0: #{tpu_custom_call.1}
  #allocation0 [shape = 'u32[]', space=smem, size = 0x4, offset = 0x4, fixed_abs, tag = 'smem constant byte address 0x4 - core index']
  #allocation1 [shape = 'u32[144,128]{1,0:T(1,128)}', space=vmem, size = 0x12000, scoped, tag = 'internal scratch']
  #allocation2 [shape = 'bf16[16,128]{1,0:T(16,128)(2,1)}', space=vmem, size = 0x1000, scoped, tag = 'scratch operand']
  %s0 = inlined_call_operand.hbm [shape: bf16[16,16], index: 0, kind: input, shape index: {}]
  %s1 = inlined_call_operand.hbm [shape: bf16[16,128], index: 1, kind: input, shape index: {}]
  %s2 = inlined_call_operand.hbm [shape: bf16[2,128,128], index: 2, kind: input, shape index: {}]
  %s3 = inlined_call_operand.vmem [shape: f32[2,1,128], index: 3, kind: input, shape index: {}]
  %s4 = inlined_call_operand.hbm [shape: bf16[2,128,128], index: 4, kind: input, shape index: {}]
  %s5 = inlined_call_operand.vmem [shape: f32[2,1,128], index: 5, kind: input, shape index: {}]
  %s6 = inlined_call_operand.vmem [shape: bf16[8,16], index: 6, kind: input, shape index: {}]
  %s7 = inlined_call_operand.hbm [shape: bf16[128,128], index: 7, kind: input, shape index: {}]
  %s8 = inlined_call_operand.vmem [shape: f32[1,128], index: 8, kind: input, shape index: {}]
  %s9 = inlined_call_operand.hbm [shape: bf16[128,128], index: 9, kind: input, shape index: {}]
  %s10 = inlined_call_operand.vmem [shape: f32[1,128], index: 10, kind: input, shape index: {}]
  %s11 = inlined_call_operand.hbm [shape: f32[8,128], index: 11, kind: output, shape index: {}]
  %s12 = sld [smem:[#allocation0]]
  $region109: #{tpu_custom_call.1} parent=0
    _
  %s14 = ssub.s32 1, %s12
  %s15 = scalar_select 0, %s14, %s12
  $region1: #{tpu_custom_call.1} parent=0
    #allocation3 [shape = 'u8[4096]{0}', space=vmem, size = 0x1000, scoped, tag = 'input window, operand 0, single buffered']
    #allocation4 [shape = 's32[2]{0}', space=sflag, size = 0x8, scoped, tag = 'scoped memory for tpu_custom_call.1']
    #allocation5 [shape = 's32[2]{0}', space=sflag, size = 0x8, scoped, tag = 'scoped memory for tpu_custom_call.1']
    #allocation6 [shape = 'u8[4096]{0}', space=vmem, size = 0x1000, scoped, tag = 'input window, operand 1, single buffered']
    #allocation7 [shape = 's32[1]{0}', space=sflag, size = 0x4, scoped, tag = 'scoped memory for tpu_custom_call.1']
    #allocation8 [shape = 'u8[65536]{0}', space=vmem, size = 0x10000, scoped, tag = 'input window, operand 2']
    #allocation9 [shape = 'u8[65536]{0}', space=vmem, size = 0x10000, scoped, tag = 'input window, operand 4']
    #allocation10 [shape = 'u8[32768]{0}', space=vmem, size = 0x8000, scoped, tag = 'input window, operand 7, single buffered']
    #allocation11 [shape = 'u8[32768]{0}', space=vmem, size = 0x8000, scoped, tag = 'input window, operand 9, single buffered']
    #allocation12 [shape = 's32[1]{0}', space=sflag, size = 0x4, scoped, tag = 'scoped memory for tpu_custom_call.1']
    #allocation13 [shape = 'u8[4096]{0}', space=vmem, size = 0x1000, scoped, tag = 'output window, operand 0, single buffered']
    %16 = vsyncpa [#allocation4], 0
    %17 = vsyncpa [#allocation7], 0
    %18 = vsyncpa [#allocation12], 0
    %19 = vsyncpa [#allocation5], 0
    loop: start=0, step=1, limit=4
    $region2: #{tpu_custom_call.1} parent=1 // loop_pre_header
      _
    $region3: #{tpu_custom_call.1} parent=1 // loop_header
      %s21 = sphi 0, %s25
      %p22 = scmp.ge.s32.totalorder %s21, 4
      %s29 = sphi 0, %s29
      %s31 = sphi 0, %s29
      %s32 = sphi 0, %s31
      %s46 = sphi 0, %s32
      %s50 = sphi 0, %s50
      %s52 = sphi 0, %s50
      %s53 = sphi 0, %s52
      %s67 = sphi 0, %s53
      %s73 = sphi 0, %s75
      %s76 = sphi 0, %s73
      %s77 = sphi 0, %s76
      %s93 = sphi 0, %s77
      %s99 = sphi 0, %s101
      %s102 = sphi 0, %s99
      %s103 = sphi 0, %s102
      %s119 = sphi 0, %s103
      %s125 = sphi 0, %s127
      %s128 = sphi 0, %s125
      %s129 = sphi 0, %s128
      %s145 = sphi 0, %s129
      %s151 = sphi 0, %s153
      %s154 = sphi 0, %s151
      %s155 = sphi 0, %s154
      %s171 = sphi 0, %s155
      %s175 = sphi 0, %s175
      %s177 = sphi 0, %s175
      %s178 = sphi 0, %s177
      %s192 = sphi 0, %s178
      %s196 = sphi 0, %s196
      %s198 = sphi 0, %s196
      %s199 = sphi 0, %s198
      %s213 = sphi 0, %s199
      %s217 = sphi 0, %s217
      %s219 = sphi 0, %s217
      %s220 = sphi 0, %s219
      %s234 = sphi 0, %s220
      %s238 = sphi 0, %s238
      %s240 = sphi 0, %s238
      %s241 = sphi 0, %s240
      %s255 = sphi 0, %s241
      %s259 = sphi 0, %s259
      %s261 = sphi 0, %s259
      %s262 = sphi 0, %s261
      %s276 = sphi 0, %s262
      %s280 = sphi 0, %s280
      %s282 = sphi 0, %s280
      %s283 = sphi 0, %s282
      %s297 = sphi 0, %s283
    $region4: #{tpu_custom_call.1} parent=1 // loop_header_branch
      %24 = sbr.rel (%p22) target = $region8
    $region5: #{tpu_custom_call.1} parent=1 // loop_body
      %s26 = ssub.s32 %s21, 1
      %s27 = ssub.s32 %s21, 2
      %s28 = sadd.s32 %s21, 1
      %s30 = sadd.s32 %s29, 1
      %p33 = scmp.eq.s32.totalorder %s21, 1
      %p34 = scmp.ne.s32.totalorder %s29, %s31
      %p35 = scmp.eq.s32.totalorder %s21, 0
      %p36 = por %p34, %p35
      %p37 = scmp.ne.s32.totalorder %s29, %s31
      %p38 = scmp.eq.s32.totalorder %s26, 1
      %p39 = por %p37, %p38
      %p40 = scmp.ne.s32.totalorder %s31, %s32
      %p41 = scmp.eq.s32.totalorder %s26, 0
      %p42 = por %p40, %p41
      %p43 = scmp.ne.s32.totalorder %s31, %s32
      %p44 = scmp.eq.s32.totalorder %s27, 1
      %p45 = por %p43, %p44
      %p47 = scmp.ne.s32.totalorder %s32, %s46
      %p48 = scmp.eq.s32.totalorder %s27, 0
      %p49 = por %p47, %p48
      %s51 = sadd.s32 %s50, 1
      %p54 = scmp.eq.s32.totalorder %s21, 1
      %p55 = scmp.ne.s32.totalorder %s50, %s52
      %p56 = scmp.eq.s32.totalorder %s21, 0
      %p57 = por %p55, %p56
      %p58 = scmp.ne.s32.totalorder %s50, %s52
      %p59 = scmp.eq.s32.totalorder %s26, 1
      %p60 = por %p58, %p59
      %p61 = scmp.ne.s32.totalorder %s52, %s53
      %p62 = scmp.eq.s32.totalorder %s26, 0
      %p63 = por %p61, %p62
      %p64 = scmp.ne.s32.totalorder %s52, %s53
      %p65 = scmp.eq.s32.totalorder %s27, 1
      %p66 = por %p64, %p65
      %p68 = scmp.ne.s32.totalorder %s53, %s67
      %p69 = scmp.eq.s32.totalorder %s27, 0
      %p70 = por %p68, %p69
      %s71 = ssub.s32 %s21, %s28
      %p72 = scmp.eq.s32.totalorder %s71, 0
      %s74 = sadd.s32 %s73, 1
      %s75 = scalar_select %p72, %s73, %s74
      %p78 = pneg %p72
      %p79 = scmp.eq.s32.totalorder %s21, 1
      %p80 = por %p78, %p79
      %p81 = scmp.ne.s32.totalorder %s73, %s76
      %p82 = scmp.eq.s32.totalorder %s21, 0
      %p83 = por %p81, %p82
      %p84 = scmp.ne.s32.totalorder %s73, %s76
      %p85 = scmp.eq.s32.totalorder %s26, 1
      %p86 = por %p84, %p85
      %p87 = scmp.ne.s32.totalorder %s76, %s77
      %p88 = scmp.eq.s32.totalorder %s26, 0
      %p89 = por %p87, %p88
      %p90 = scmp.ne.s32.totalorder %s76, %s77
      %p91 = scmp.eq.s32.totalorder %s27, 1
      %p92 = por %p90, %p91
      %p94 = scmp.ne.s32.totalorder %s77, %s93
      %p95 = scmp.eq.s32.totalorder %s27, 0
      %p96 = por %p94, %p95
      %s97 = ssub.s32 %s21, %s28
      %p98 = scmp.eq.s32.totalorder %s97, 0
      %s100 = sadd.s32 %s99, 1
      %s101 = scalar_select %p98, %s99, %s100
      %p104 = pneg %p98
      %p105 = scmp.eq.s32.totalorder %s21, 1
      %p106 = por %p104, %p105
      %p107 = scmp.ne.s32.totalorder %s99, %s102
      %p108 = scmp.eq.s32.totalorder %s21, 0
      %p109 = por %p107, %p108
      %p110 = scmp.ne.s32.totalorder %s99, %s102
      %p111 = scmp.eq.s32.totalorder %s26, 1
      %p112 = por %p110, %p111
      %p113 = scmp.ne.s32.totalorder %s102, %s103
      %p114 = scmp.eq.s32.totalorder %s26, 0
      %p115 = por %p113, %p114
      %p116 = scmp.ne.s32.totalorder %s102, %s103
      %p117 = scmp.eq.s32.totalorder %s27, 1
      %p118 = por %p116, %p117
      %p120 = scmp.ne.s32.totalorder %s103, %s119
      %p121 = scmp.eq.s32.totalorder %s27, 0
      %p122 = por %p120, %p121
      %s123 = ssub.s32 %s21, %s28
      %p124 = scmp.eq.s32.totalorder %s123, 0
      %s126 = sadd.s32 %s125, 1
      %s127 = scalar_select %p124, %s125, %s126
      %p130 = pneg %p124
      %p131 = scmp.eq.s32.totalorder %s21, 1
      %p132 = por %p130, %p131
      %p133 = scmp.ne.s32.totalorder %s125, %s128
      %p134 = scmp.eq.s32.totalorder %s21, 0
      %p135 = por %p133, %p134
      %p136 = scmp.ne.s32.totalorder %s125, %s128
      %p137 = scmp.eq.s32.totalorder %s26, 1
      %p138 = por %p136, %p137
      %p139 = scmp.ne.s32.totalorder %s128, %s129
      %p140 = scmp.eq.s32.totalorder %s26, 0
      %p141 = por %p139, %p140
      %p142 = scmp.ne.s32.totalorder %s128, %s129
      %p143 = scmp.eq.s32.totalorder %s27, 1
      %p144 = por %p142, %p143
      %p146 = scmp.ne.s32.totalorder %s129, %s145
      %p147 = scmp.eq.s32.totalorder %s27, 0
      %p148 = por %p146, %p147
      %s149 = ssub.s32 %s21, %s28
      %p150 = scmp.eq.s32.totalorder %s149, 0
      %s152 = sadd.s32 %s151, 1
      %s153 = scalar_select %p150, %s151, %s152
      %p156 = pneg %p150
      %p157 = scmp.eq.s32.totalorder %s21, 1
      %p158 = por %p156, %p157
      %p159 = scmp.ne.s32.totalorder %s151, %s154
      %p160 = scmp.eq.s32.totalorder %s21, 0
      %p161 = por %p159, %p160
      %p162 = scmp.ne.s32.totalorder %s151, %s154
      %p163 = scmp.eq.s32.totalorder %s26, 1
      %p164 = por %p162, %p163
      %p165 = scmp.ne.s32.totalorder %s154, %s155
      %p166 = scmp.eq.s32.totalorder %s26, 0
      %p167 = por %p165, %p166
      %p168 = scmp.ne.s32.totalorder %s154, %s155
      %p169 = scmp.eq.s32.totalorder %s27, 1
      %p170 = por %p168, %p169
      %p172 = scmp.ne.s32.totalorder %s155, %s171
      %p173 = scmp.eq.s32.totalorder %s27, 0
      %p174 = por %p172, %p173
      %s176 = sadd.s32 %s175, 1
      %p179 = scmp.eq.s32.totalorder %s21, 1
      %p180 = scmp.ne.s32.totalorder %s175, %s177
      %p181 = scmp.eq.s32.totalorder %s21, 0
      %p182 = por %p180, %p181
      %p183 = scmp.ne.s32.totalorder %s175, %s177
      %p184 = scmp.eq.s32.totalorder %s26, 1
      %p185 = por %p183, %p184
      %p186 = scmp.ne.s32.totalorder %s177, %s178
      %p187 = scmp.eq.s32.totalorder %s26, 0
      %p188 = por %p186, %p187
      %p189 = scmp.ne.s32.totalorder %s177, %s178
      %p190 = scmp.eq.s32.totalorder %s27, 1
      %p191 = por %p189, %p190
      %p193 = scmp.ne.s32.totalorder %s178, %s192
      %p194 = scmp.eq.s32.totalorder %s27, 0
      %p195 = por %p193, %p194
      %s197 = sadd.s32 %s196, 1
      %p200 = scmp.eq.s32.totalorder %s21, 1
      %p201 = scmp.ne.s32.totalorder %s196, %s198
      %p202 = scmp.eq.s32.totalorder %s21, 0
      %p203 = por %p201, %p202
      %p204 = scmp.ne.s32.totalorder %s196, %s198
      %p205 = scmp.eq.s32.totalorder %s26, 1
      %p206 = por %p204, %p205
      %p207 = scmp.ne.s32.totalorder %s198, %s199
      %p208 = scmp.eq.s32.totalorder %s26, 0
      %p209 = por %p207, %p208
      %p210 = scmp.ne.s32.totalorder %s198, %s199
      %p211 = scmp.eq.s32.totalorder %s27, 1
      %p212 = por %p210, %p211
      %p214 = scmp.ne.s32.totalorder %s199, %s213
      %p215 = scmp.eq.s32.totalorder %s27, 0
      %p216 = por %p214, %p215
      %s218 = sadd.s32 %s217, 1
      %p221 = scmp.eq.s32.totalorder %s21, 1
      %p222 = scmp.ne.s32.totalorder %s217, %s219
      %p223 = scmp.eq.s32.totalorder %s21, 0
      %p224 = por %p222, %p223
      %p225 = scmp.ne.s32.totalorder %s217, %s219
      %p226 = scmp.eq.s32.totalorder %s26, 1
      %p227 = por %p225, %p226
      %p228 = scmp.ne.s32.totalorder %s219, %s220
      %p229 = scmp.eq.s32.totalorder %s26, 0
      %p230 = por %p228, %p229
      %p231 = scmp.ne.s32.totalorder %s219, %s220
      %p232 = scmp.eq.s32.totalorder %s27, 1
      %p233 = por %p231, %p232
      %p235 = scmp.ne.s32.totalorder %s220, %s234
      %p236 = scmp.eq.s32.totalorder %s27, 0
      %p237 = por %p235, %p236
      %s239 = sadd.s32 %s238, 1
      %p242 = scmp.eq.s32.totalorder %s21, 1
      %p243 = scmp.ne.s32.totalorder %s238, %s240
      %p244 = scmp.eq.s32.totalorder %s21, 0
      %p245 = por %p243, %p244
      %p246 = scmp.ne.s32.totalorder %s238, %s240
      %p247 = scmp.eq.s32.totalorder %s26, 1
      %p248 = por %p246, %p247
      %p249 = scmp.ne.s32.totalorder %s240, %s241
      %p250 = scmp.eq.s32.totalorder %s26, 0
      %p251 = por %p249, %p250
      %p252 = scmp.ne.s32.totalorder %s240, %s241
      %p253 = scmp.eq.s32.totalorder %s27, 1
      %p254 = por %p252, %p253
      %p256 = scmp.ne.s32.totalorder %s241, %s255
      %p257 = scmp.eq.s32.totalorder %s27, 0
      %p258 = por %p256, %p257
      %s260 = sadd.s32 %s259, 1
      %p263 = scmp.eq.s32.totalorder %s21, 1
      %p264 = scmp.ne.s32.totalorder %s259, %s261
      %p265 = scmp.eq.s32.totalorder %s21, 0
      %p266 = por %p264, %p265
      %p267 = scmp.ne.s32.totalorder %s259, %s261
      %p268 = scmp.eq.s32.totalorder %s26, 1
      %p269 = por %p267, %p268
      %p270 = scmp.ne.s32.totalorder %s261, %s262
      %p271 = scmp.eq.s32.totalorder %s26, 0
      %p272 = por %p270, %p271
      %p273 = scmp.ne.s32.totalorder %s261, %s262
      %p274 = scmp.eq.s32.totalorder %s27, 1
      %p275 = por %p273, %p274
      %p277 = scmp.ne.s32.totalorder %s262, %s276
      %p278 = scmp.eq.s32.totalorder %s27, 0
      %p279 = por %p277, %p278
      %s281 = sadd.s32 %s280, 1
      %p284 = scmp.eq.s32.totalorder %s21, 1
      %p285 = scmp.ne.s32.totalorder %s280, %s282
      %p286 = scmp.eq.s32.totalorder %s21, 0
      %p287 = por %p285, %p286
      %p288 = scmp.ne.s32.totalorder %s280, %s282
      %p289 = scmp.eq.s32.totalorder %s26, 1
      %p290 = por %p288, %p289
      %p291 = scmp.ne.s32.totalorder %s282, %s283
      %p292 = scmp.eq.s32.totalorder %s26, 0
      %p293 = por %p291, %p292
      %p294 = scmp.ne.s32.totalorder %s282, %s283
      %p295 = scmp.eq.s32.totalorder %s27, 1
      %p296 = por %p294, %p295
      %p298 = scmp.ne.s32.totalorder %s283, %s297
      %p299 = scmp.eq.s32.totalorder %s27, 0
      %p300 = por %p298, %p299
      %p301 = scmp.le.s32.totalorder 1, %s21
      %p302 = scmp.lt.s32.totalorder %s21, 3
      %p303 = pnand %p301, %p302
      %p304 = pneg %p303
      // Predicated region
      $region9: #{tpu_custom_call.1} parent=5 // pred_check
        _
      $region10: #{tpu_custom_call.1} parent=5 // pred_check_branch
        %306 = sbr.rel (%p303) target = $region12
      $region11: #{tpu_custom_call.1} parent=5 // pred_region
        %s307 = ssub.s32 %s21, 1
        // Predicated region
        $region13: #{tpu_custom_call.1} parent=11 // pred_check
          %p308 = pneg %p42
        $region14: #{tpu_custom_call.1} parent=11 // pred_check_branch
          %310 = sbr.rel (%p308) target = $region16
        $region15: #{tpu_custom_call.1} parent=11 // pred_region
          %s312 = ssub.s32 128, 128
          %313 = vsyncadd [#allocation4], %s312
          %s314 = sshll.u32 [#allocation3], 4
          %s315 = int_to_ptr.vmem [resolvable:$true] %s314
          %320 = dma.hbm_to_vmem [thread:$0]  %s0, 128, %s315, [#allocation4], 64, 64, 4
        $region16: #{tpu_custom_call.1} parent=11 // pred_fallthru
          _
        // Predicated region
        $region17: #{tpu_custom_call.1} parent=11 // pred_check
          %p321 = pneg %p63
        $region18: #{tpu_custom_call.1} parent=11 // pred_check_branch
          %323 = sbr.rel (%p321) target = $region20
        $region19: #{tpu_custom_call.1} parent=11 // pred_region
          %s325 = ssub.s32 128, 128
          %326 = vsyncadd [#allocation7], %s325
          %s327 = sshll.u32 [#allocation6], 4
          %s328 = int_to_ptr.vmem [resolvable:$true] %s327
          %333 = dma.hbm_to_vmem [thread:$0]  %s1, 128, %s328, [#allocation7], 64, 64, 4
        $region20: #{tpu_custom_call.1} parent=11 // pred_fallthru
          _
        // Predicated region
        $region21: #{tpu_custom_call.1} parent=11 // pred_check
          %p334 = pneg %p188
        $region22: #{tpu_custom_call.1} parent=11 // pred_check_branch
          %336 = sbr.rel (%p334) target = $region24
        $region23: #{tpu_custom_call.1} parent=11 // pred_region
          _
        $region24: #{tpu_custom_call.1} parent=11 // pred_fallthru
          _
        // Predicated region
        $region25: #{tpu_custom_call.1} parent=11 // pred_check
          %p337 = pneg %p209
        $region26: #{tpu_custom_call.1} parent=11 // pred_check_branch
          %339 = sbr.rel (%p337) target = $region28
        $region27: #{tpu_custom_call.1} parent=11 // pred_region
          %s341 = ssub.s32 1024, 1024
          %342 = vsyncadd [#allocation7], %s341
          %s343 = sshll.u32 [#allocation10], 4
          %s344 = int_to_ptr.vmem [resolvable:$true] %s343
          %349 = dma.hbm_to_vmem [thread:$0]  %s7, 1024, %s344, [#allocation7], 64, 64, 4
        $region28: #{tpu_custom_call.1} parent=11 // pred_fallthru
          _
        // Predicated region
        $region29: #{tpu_custom_call.1} parent=11 // pred_check
          %p350 = pneg %p230
        $region30: #{tpu_custom_call.1} parent=11 // pred_check_branch
          %352 = sbr.rel (%p350) target = $region32
        $region31: #{tpu_custom_call.1} parent=11 // pred_region
          _
        $region32: #{tpu_custom_call.1} parent=11 // pred_fallthru
          _
        // Predicated region
        $region33: #{tpu_custom_call.1} parent=11 // pred_check
          %p353 = pneg %p251
        $region34: #{tpu_custom_call.1} parent=11 // pred_check_branch
          %355 = sbr.rel (%p353) target = $region36
        $region35: #{tpu_custom_call.1} parent=11 // pred_region
          %s357 = ssub.s32 1024, 1024
          %358 = vsyncadd [#allocation12], %s357
          %s359 = sshll.u32 [#allocation11], 4
          %s360 = int_to_ptr.vmem [resolvable:$true] %s359
          %365 = dma.hbm_to_vmem [thread:$0]  %s9, 1024, %s360, [#allocation12], 64, 64, 4
        $region36: #{tpu_custom_call.1} parent=11 // pred_fallthru
          _
        // Predicated region
        $region37: #{tpu_custom_call.1} parent=11 // pred_check
          %p366 = pneg %p272
        $region38: #{tpu_custom_call.1} parent=11 // pred_check_branch
          %368 = sbr.rel (%p366) target = $region40
        $region39: #{tpu_custom_call.1} parent=11 // pred_region
          _
        $region40: #{tpu_custom_call.1} parent=11 // pred_fallthru
          _
      $region12: #{tpu_custom_call.1} parent=5 // pred_fallthru
        _
      %p369 = scmp.lt.s32.totalorder %s21, 2
      // Predicated region
      $region41: #{tpu_custom_call.1} parent=5 // pred_check
        %p370 = pneg %p369
      $region42: #{tpu_custom_call.1} parent=5 // pred_check_branch
        %372 = sbr.rel (%p370) target = $region44
      $region43: #{tpu_custom_call.1} parent=5 // pred_region
        // Predicated region
        $region45: #{tpu_custom_call.1} parent=43 // pred_check
          %p373 = pneg %p83
        $region46: #{tpu_custom_call.1} parent=43 // pred_check_branch
          %375 = sbr.rel (%p373) target = $region48
        $region47: #{tpu_custom_call.1} parent=43 // pred_region
          %s376 = sand.u32 %s21, 1
          %s377 = scalar_lea.sflag [#allocation4], %s376
          %s378 = sand.u32 %s73, 1
          %s379 = smul.addr %s378, 64
          %s380 = scalar_lea.vmem [#allocation8], %s379
          %s382 = ssub.s32 1024, 1024
          %383 = vsyncadd %s377, %s382
          %s384 = smul.addr %s21, 16
          %s385 = smul.addr %s384, 64
          %s386 = scalar_lea.hbm %s2, %s385
          %s387 = sshll.u32 %s380, 4
          %s388 = int_to_ptr.vmem [resolvable:$true] %s387
          %393 = dma.hbm_to_vmem [thread:$0]  %s386, 1024, %s388, %s377, 64, 64, 4
        $region48: #{tpu_custom_call.1} parent=43 // pred_fallthru
          _
        // Predicated region
        $region49: #{tpu_custom_call.1} parent=43 // pred_check
          %p394 = pneg %p109
        $region50: #{tpu_custom_call.1} parent=43 // pred_check_branch
          %396 = sbr.rel (%p394) target = $region52
        $region51: #{tpu_custom_call.1} parent=43 // pred_region
          %p397 = scmp.lt.s32.totalorder %s21, 1
          %s398 = scalar_select %p397, %s21, 1
          %s399 = scalar_lea.vmem %s3, %s398
        $region52: #{tpu_custom_call.1} parent=43 // pred_fallthru
          _
        // Predicated region
        $region53: #{tpu_custom_call.1} parent=43 // pred_check
          %p400 = pneg %p135
        $region54: #{tpu_custom_call.1} parent=43 // pred_check_branch
          %402 = sbr.rel (%p400) target = $region56
        $region55: #{tpu_custom_call.1} parent=43 // pred_region
          %s403 = sand.u32 %s21, 1
          %s404 = scalar_lea.sflag [#allocation4], %s403
          %s405 = sand.u32 %s125, 1
          %s406 = smul.addr %s405, 64
          %s407 = scalar_lea.vmem [#allocation9], %s406
          %s409 = ssub.s32 1024, 1024
          %410 = vsyncadd %s404, %s409
          %s411 = smul.addr %s21, 16
          %s412 = smul.addr %s411, 64
          %s413 = scalar_lea.hbm %s4, %s412
          %s414 = sshll.u32 %s407, 4
          %s415 = int_to_ptr.vmem [resolvable:$true] %s414
          %420 = dma.hbm_to_vmem [thread:$0]  %s413, 1024, %s415, %s404, 64, 64, 4
        $region56: #{tpu_custom_call.1} parent=43 // pred_fallthru
          _
        // Predicated region
        $region57: #{tpu_custom_call.1} parent=43 // pred_check
          %p421 = pneg %p161
        $region58: #{tpu_custom_call.1} parent=43 // pred_check_branch
          %423 = sbr.rel (%p421) target = $region60
        $region59: #{tpu_custom_call.1} parent=43 // pred_region
          %p424 = scmp.lt.s32.totalorder %s21, 1
          %s425 = scalar_select %p424, %s21, 1
          %s426 = scalar_lea.vmem %s5, %s425
        $region60: #{tpu_custom_call.1} parent=43 // pred_fallthru
          _
      $region44: #{tpu_custom_call.1} parent=5 // pred_fallthru
        _
      %p427 = scmp.le.s32.totalorder 1, %s21
      %p428 = scmp.lt.s32.totalorder %s21, 3
      %p429 = pnand %p427, %p428
      %p430 = pneg %p429
      // Predicated region
      $region61: #{tpu_custom_call.1} parent=5 // pred_check
        _
      $region62: #{tpu_custom_call.1} parent=5 // pred_check_branch
        %432 = sbr.rel (%p429) target = $region64
      $region63: #{tpu_custom_call.1} parent=5 // pred_region
        %s433 = ssub.s32 %s21, 1
        // Predicated region
        $region65: #{tpu_custom_call.1} parent=63 // pred_check
          %p434 = pneg %p42
        $region66: #{tpu_custom_call.1} parent=63 // pred_check_branch
          %436 = sbr.rel (%p434) target = $region68
        $region67: #{tpu_custom_call.1} parent=63 // pred_region
          %437 = dma.done [#allocation4], 128
        $region68: #{tpu_custom_call.1} parent=63 // pred_fallthru
          _
        // Predicated region
        $region69: #{tpu_custom_call.1} parent=63 // pred_check
          %p438 = pneg %p63
        $region70: #{tpu_custom_call.1} parent=63 // pred_check_branch
          %440 = sbr.rel (%p438) target = $region72
        $region71: #{tpu_custom_call.1} parent=63 // pred_region
          %441 = dma.done [#allocation7], 128
        $region72: #{tpu_custom_call.1} parent=63 // pred_fallthru
          _
        %s442 = sand.u32 %s26, 1
        %s443 = scalar_lea.sflag [#allocation4], %s442
        %s444 = sand.u32 %s76, 1
        %s445 = smul.addr %s444, 64
        %s446 = scalar_lea.vmem [#allocation8], %s445
        // Predicated region
        $region73: #{tpu_custom_call.1} parent=63 // pred_check
          %p447 = pneg %p89
        $region74: #{tpu_custom_call.1} parent=63 // pred_check_branch
          %449 = sbr.rel (%p447) target = $region76
        $region75: #{tpu_custom_call.1} parent=63 // pred_region
          %450 = dma.done %s443, 1024
        $region76: #{tpu_custom_call.1} parent=63 // pred_fallthru
          _
        %s451 = sand.u32 %s26, 1
        %s452 = scalar_lea.sflag [#allocation4], %s451
        %s453 = sand.u32 %s128, 1
        %s454 = smul.addr %s453, 64
        %s455 = scalar_lea.vmem [#allocation9], %s454
        // Predicated region
        $region77: #{tpu_custom_call.1} parent=63 // pred_check
          %p456 = pneg %p141
        $region78: #{tpu_custom_call.1} parent=63 // pred_check_branch
          %458 = sbr.rel (%p456) target = $region80
        $region79: #{tpu_custom_call.1} parent=63 // pred_region
          %459 = dma.done %s452, 1024
        $region80: #{tpu_custom_call.1} parent=63 // pred_fallthru
          _
        // Predicated region
        $region81: #{tpu_custom_call.1} parent=63 // pred_check
          %p460 = pneg %p209
        $region82: #{tpu_custom_call.1} parent=63 // pred_check_branch
          %462 = sbr.rel (%p460) target = $region84
        $region83: #{tpu_custom_call.1} parent=63 // pred_region
          %463 = dma.done [#allocation7], 1024
        $region84: #{tpu_custom_call.1} parent=63 // pred_fallthru
          _
        // Predicated region
        $region85: #{tpu_custom_call.1} parent=63 // pred_check
          %p464 = pneg %p251
        $region86: #{tpu_custom_call.1} parent=63 // pred_check_branch
          %466 = sbr.rel (%p464) target = $region88
        $region87: #{tpu_custom_call.1} parent=63 // pred_region
          %467 = dma.done [#allocation12], 1024
        $region88: #{tpu_custom_call.1} parent=63 // pred_fallthru
          _
        %p468 = pneg %p42
        %p469 = pneg %p39
        %p470 = pneg %p63
        %p471 = pneg %p60
        %s472 = sand.u32 %s26, 1
        %s473 = scalar_lea.sflag [#allocation4], %s472
        %s474 = sand.u32 %s76, 1
        %s475 = smul.addr %s474, 64
        %s476 = scalar_lea.vmem [#allocation8], %s475
        %p477 = pneg %p89
        %p478 = pneg %p86
        %p479 = scmp.lt.s32.totalorder %s26, 1
        %s480 = scalar_select %p479, %s26, 1
        %s481 = scalar_lea.vmem %s3, %s480
        %p482 = pneg %p115
        %p483 = pneg %p112
        %s484 = sand.u32 %s26, 1
        %s485 = scalar_lea.sflag [#allocation4], %s484
        %s486 = sand.u32 %s128, 1
        %s487 = smul.addr %s486, 64
        %s488 = scalar_lea.vmem [#allocation9], %s487
        %p489 = pneg %p141
        %p490 = pneg %p138
        %p491 = scmp.lt.s32.totalorder %s26, 1
        %s492 = scalar_select %p491, %s26, 1
        %s493 = scalar_lea.vmem %s5, %s492
        %p494 = pneg %p167
        %p495 = pneg %p164
        %p496 = pneg %p188
        %p497 = pneg %p185
        %p498 = pneg %p209
        %p499 = pneg %p206
        %p500 = pneg %p230
        %p501 = pneg %p227
        %p502 = pneg %p251
        %p503 = pneg %p248
        %p504 = pneg %p272
        %p505 = pneg %p269
        %p506 = pneg %p293
        %p507 = pneg %p290
        %p508 = scmp.lt.s32.totalorder %s26, 1
        %s509 = scalar_select %p508, %s26, 1
        %s510 = scalar_lea.vmem %s3, %s509
        %p511 = scmp.lt.s32.totalorder %s26, 1
        %s512 = scalar_select %p511, %s26, 1
        %s513 = scalar_lea.vmem %s5, %s512
        %p515 = scmp.eq.s32.totalorder %s26, 0
        // Predicated region
        $region89: #{tpu_custom_call.1} parent=63 // pred_check
          %p516 = pneg %p515
        $region90: #{tpu_custom_call.1} parent=63 // pred_check_branch
          %518 = sbr.rel (%p516) target = $region92
        $region91: #{tpu_custom_call.1} parent=63 // pred_region
          %v519 = vld [vmem:[#allocation6] sm:$0xf]
          %v520 = vld [vmem:[#allocation6 + $0x4] sm:$0xf]
          %v523 = vunpack.c.l.b16 %v519
          %v524 = vunpack.c.l.b16 %v520
          %v525 = vpack.c.b16 %v524, %v523
          %527 = vst [vmem:[#allocation2] sm:$0xff] %v525
        $region92: #{tpu_custom_call.1} parent=63 // pred_fallthru
          _
        %v528 = vld [vmem:[#allocation3] sm:$0xf]
        %v529 = vld [vmem:[#allocation3 + $0x4] sm:$0xf]
        %v530 = vld [vmem:[#allocation2] sm:$0xff]
        %v533 = vunpack.c.l.b16 %v528
        %v534 = vunpack.c.l.b16 %v529
        %v535 = vpack.c.b16 %v534, %v533
        %vm536 = vcmask 130048
        %v538 = vsel %vm536, %v535, 0
        %540 = vmatprep.subr.bf16.mxu0 0
        %541 = vmatpush1.bf16.msra.mxu0 %v530
        %542 = vmatprep.subr.bf16.mxu0 0
        %543 = vmatpush1.bf16.msra.mxu0 0
        %544 = vmatprep.subr.bf16.mxu0 0
        %545 = vmatpush1.bf16.msra.mxu0 0
        %546 = vmatprep.subr.bf16.mxu0 0
        %547 = vmatpush1.bf16.msra.mxu0 0
        %548 = vmatprep.subr.bf16.mxu0 0
        %549 = vmatpush1.bf16.msra.mxu0 0
        %550 = vmatprep.subr.bf16.mxu0 0
        %551 = vmatpush1.bf16.msra.mxu0 0
        %552 = vmatprep.subr.bf16.mxu0 0
        %553 = vmatpush1.bf16.msra.mxu0 0
        %554 = vmatprep.subr.bf16.mxu0 0
        %555 = vmatpush1.bf16.msra.mxu0 0
        %556 = vmatprep.subr.bf16.mxu0 0
        %557 = vmatpush1.bf16.msra.mxu0 0
        %558 = vmatprep.subr.bf16.mxu0 0
        %559 = vmatpush1.bf16.msra.mxu0 0
        %560 = vmatprep.subr.bf16.mxu0 0
        %561 = vmatpush1.bf16.msra.mxu0 0
        %562 = vmatprep.subr.bf16.mxu0 0
        %563 = vmatpush1.bf16.msra.mxu0 0
        %564 = vmatprep.subr.bf16.mxu0 0
        %565 = vmatpush1.bf16.msra.mxu0 0
        %566 = vmatprep.subr.bf16.mxu0 0
        %567 = vmatpush1.bf16.msra.mxu0 0
        %568 = vmatprep.subr.bf16.mxu0 0
        %569 = vmatpush1.bf16.msra.mxu0 0
        %570 = vmatprep.subr.bf16.mxu0 0
        %571 = vmatpush1.bf16.msra.mxu0 0
        %572 = vmatprep.mubr.bf16.mxu0 0
        %573 = vmatmul.mubr.bf16.gmra.mrb[0].mxu0 %v538
        %v574 = vpop.f32.mrb[0].mxu0
        %v575 = vadd.f32 0.0, %v574
        %v576 = vpop.f32.mrb[0].mxu0
        %v577 = vpop.f32.mrb[0].mxu0
        %v578 = vadd.f32 0.0, %v577
        %v579 = vpop.f32.mrb[0].mxu0
        %580 = vdwg.mxu0
        %v581 = vpack.c.bf16 %v578, %v575
        %v582 = vld [vmem:[%s446] sm:$0xf]
        %v583 = vld [vmem:[%s446 + $0x4] sm:$0xf]
        %v584 = vld [vmem:[%s446 + $0x8] sm:$0xf]
        %v585 = vld [vmem:[%s446 + $0xc] sm:$0xf]
        %v586 = vld [vmem:[%s446 + $0x10] sm:$0xf]
        %v587 = vld [vmem:[%s446 + $0x14] sm:$0xf]
        %v588 = vld [vmem:[%s446 + $0x18] sm:$0xf]
        %v589 = vld [vmem:[%s446 + $0x1c] sm:$0xf]
        %v590 = vld [vmem:[%s446 + $0x20] sm:$0xf]
        %v591 = vld [vmem:[%s446 + $0x24] sm:$0xf]
        %v592 = vld [vmem:[%s446 + $0x28] sm:$0xf]
        %v593 = vld [vmem:[%s446 + $0x2c] sm:$0xf]
        %v594 = vld [vmem:[%s446 + $0x30] sm:$0xf]
        %v595 = vld [vmem:[%s446 + $0x34] sm:$0xf]
        %v596 = vld [vmem:[%s446 + $0x38] sm:$0xf]
        %v597 = vld [vmem:[%s446 + $0x3c] sm:$0xf]
        %v598 = vld [vmem:[%s510] sm:$0x1]
        %v600 = vlaneseq
        %v601 = vshrl.u32 %v600, 7
        %v602 = vsub.s32 0, %v601
        %v603 = vrot.slane %v598, %v602
        %v621 = vunpack.c.l.b16 %v582
        %v622 = vunpack.c.l.b16 %v583
        %v623 = vunpack.c.l.b16 %v584
        %v624 = vunpack.c.l.b16 %v585
        %v625 = vunpack.c.l.b16 %v586
        %v626 = vunpack.c.l.b16 %v587
        %v627 = vunpack.c.l.b16 %v588
        %v628 = vunpack.c.l.b16 %v589
        %v629 = vunpack.c.l.b16 %v590
        %v630 = vunpack.c.l.b16 %v591
        %v631 = vunpack.c.l.b16 %v592
        %v632 = vunpack.c.l.b16 %v593
        %v633 = vunpack.c.l.b16 %v594
        %v634 = vunpack.c.l.b16 %v595
        %v635 = vunpack.c.l.b16 %v596
        %v636 = vunpack.c.l.b16 %v597
        %v637 = vpack.c.b16 %v622, %v621
        %v638 = vpack.c.b16 %v624, %v623
        %v639 = vpack.c.b16 %v626, %v625
        %v640 = vpack.c.b16 %v628, %v627
        %v641 = vpack.c.b16 %v630, %v629
        %v642 = vpack.c.b16 %v632, %v631
        %v643 = vpack.c.b16 %v634, %v633
        %v644 = vpack.c.b16 %v636, %v635
        %653 = vmatprep.subr.bf16.mxu0 0
        %654 = vmatpush1.bf16.msra.mxu0 %v637
        %655 = vmatprep.subr.bf16.mxu0 0
        %656 = vmatpush1.bf16.msra.mxu0 %v638
        %657 = vmatprep.subr.bf16.mxu0 0
        %658 = vmatpush1.bf16.msra.mxu0 %v639
        %659 = vmatprep.subr.bf16.mxu0 0
        %660 = vmatpush1.bf16.msra.mxu0 %v640
        %661 = vmatprep.subr.bf16.mxu0 0
        %662 = vmatpush1.bf16.msra.mxu0 %v641
        %663 = vmatprep.subr.bf16.mxu0 0
        %664 = vmatpush1.bf16.msra.mxu0 %v642
        %665 = vmatprep.subr.bf16.mxu0 0
        %666 = vmatpush1.bf16.msra.mxu0 %v643
        %667 = vmatprep.subr.bf16.mxu0 0
        %668 = vmatpush1.bf16.msra.mxu0 %v644
        %669 = vmatprep.subr.bf16.mxu0 0
        %670 = vmatpush1.bf16.msra.mxu0 0
        %671 = vmatprep.subr.bf16.mxu0 0
        %672 = vmatpush1.bf16.msra.mxu0 0
        %673 = vmatprep.subr.bf16.mxu0 0
        %674 = vmatpush1.bf16.msra.mxu0 0
        %675 = vmatprep.subr.bf16.mxu0 0
        %676 = vmatpush1.bf16.msra.mxu0 0
        %677 = vmatprep.subr.bf16.mxu0 0
        %678 = vmatpush1.bf16.msra.mxu0 0
        %679 = vmatprep.subr.bf16.mxu0 0
        %680 = vmatpush1.bf16.msra.mxu0 0
        %681 = vmatprep.subr.bf16.mxu0 0
        %682 = vmatpush1.bf16.msra.mxu0 0
        %683 = vmatprep.subr.bf16.mxu0 0
        %684 = vmatpush1.bf16.msra.mxu0 0
        %685 = vmatprep.mubr.bf16.mxu0 0
        %686 = vmatmul.mubr.bf16.gmra.mrb[0].mxu0 %v581
        %v687 = vpop.f32.mrb[0].mxu0
        %v688 = vadd.f32 %v603, %v687
        %v689 = vpop.f32.mrb[0].mxu0
        %v690 = vpop.f32.mrb[0].mxu0
        %v691 = vadd.f32 %v603, %v690
        %v692 = vpop.f32.mrb[0].mxu0
        %693 = vdwg.mxu0
        %v694 = vmax.f32 %v688, 0.0
        %v695 = vmax.f32 %v691, 0.0
        %v696 = vpack.c.bf16 %v695, %v694
        %v697 = vld [vmem:[%s455] sm:$0xf]
        %v698 = vld [vmem:[%s455 + $0x4] sm:$0xf]
        %v699 = vld [vmem:[%s455 + $0x8] sm:$0xf]
        %v700 = vld [vmem:[%s455 + $0xc] sm:$0xf]
        %v701 = vld [vmem:[%s455 + $0x10] sm:$0xf]
        %v702 = vld [vmem:[%s455 + $0x14] sm:$0xf]
        %v703 = vld [vmem:[%s455 + $0x18] sm:$0xf]
        %v704 = vld [vmem:[%s455 + $0x1c] sm:$0xf]
        %v705 = vld [vmem:[%s455 + $0x20] sm:$0xf]
        %v706 = vld [vmem:[%s455 + $0x24] sm:$0xf]
        %v707 = vld [vmem:[%s455 + $0x28] sm:$0xf]
        %v708 = vld [vmem:[%s455 + $0x2c] sm:$0xf]
        %v709 = vld [vmem:[%s455 + $0x30] sm:$0xf]
        %v710 = vld [vmem:[%s455 + $0x34] sm:$0xf]
        %v711 = vld [vmem:[%s455 + $0x38] sm:$0xf]
        %v712 = vld [vmem:[%s455 + $0x3c] sm:$0xf]
        %v713 = vld [vmem:[%s513] sm:$0x1]
        %v715 = vlaneseq
        %v716 = vshrl.u32 %v715, 7
        %v717 = vsub.s32 0, %v716
        %v718 = vrot.slane %v713, %v717
        %v736 = vunpack.c.l.b16 %v697
        %v737 = vunpack.c.l.b16 %v698
        %v738 = vunpack.c.l.b16 %v699
        %v739 = vunpack.c.l.b16 %v700
        %v740 = vunpack.c.l.b16 %v701
        %v741 = vunpack.c.l.b16 %v702
        %v742 = vunpack.c.l.b16 %v703
        %v743 = vunpack.c.l.b16 %v704
        %v744 = vunpack.c.l.b16 %v705
        %v745 = vunpack.c.l.b16 %v706
        %v746 = vunpack.c.l.b16 %v707
        %v747 = vunpack.c.l.b16 %v708
        %v748 = vunpack.c.l.b16 %v709
        %v749 = vunpack.c.l.b16 %v710
        %v750 = vunpack.c.l.b16 %v711
        %v751 = vunpack.c.l.b16 %v712
        %v752 = vpack.c.b16 %v737, %v736
        %v753 = vpack.c.b16 %v739, %v738
        %v754 = vpack.c.b16 %v741, %v740
        %v755 = vpack.c.b16 %v743, %v742
        %v756 = vpack.c.b16 %v745, %v744
        %v757 = vpack.c.b16 %v747, %v746
        %v758 = vpack.c.b16 %v749, %v748
        %v759 = vpack.c.b16 %v751, %v750
        %768 = vmatprep.subr.bf16.mxu0 0
        %769 = vmatpush1.bf16.msra.mxu0 %v752
        %770 = vmatprep.subr.bf16.mxu0 0
        %771 = vmatpush1.bf16.msra.mxu0 %v753
        %772 = vmatprep.subr.bf16.mxu0 0
        %773 = vmatpush1.bf16.msra.mxu0 %v754
        %774 = vmatprep.subr.bf16.mxu0 0
        %775 = vmatpush1.bf16.msra.mxu0 %v755
        %776 = vmatprep.subr.bf16.mxu0 0
        %777 = vmatpush1.bf16.msra.mxu0 %v756
        %778 = vmatprep.subr.bf16.mxu0 0
        %779 = vmatpush1.bf16.msra.mxu0 %v757
        %780 = vmatprep.subr.bf16.mxu0 0
        %781 = vmatpush1.bf16.msra.mxu0 %v758
        %782 = vmatprep.subr.bf16.mxu0 0
        %783 = vmatpush1.bf16.msra.mxu0 %v759
        %784 = vmatprep.subr.bf16.mxu0 0
        %785 = vmatpush1.bf16.msra.mxu0 0
        %786 = vmatprep.subr.bf16.mxu0 0
        %787 = vmatpush1.bf16.msra.mxu0 0
        %788 = vmatprep.subr.bf16.mxu0 0
        %789 = vmatpush1.bf16.msra.mxu0 0
        %790 = vmatprep.subr.bf16.mxu0 0
        %791 = vmatpush1.bf16.msra.mxu0 0
        %792 = vmatprep.subr.bf16.mxu0 0
        %793 = vmatpush1.bf16.msra.mxu0 0
        %794 = vmatprep.subr.bf16.mxu0 0
        %795 = vmatpush1.bf16.msra.mxu0 0
        %796 = vmatprep.subr.bf16.mxu0 0
        %797 = vmatpush1.bf16.msra.mxu0 0
        %798 = vmatprep.subr.bf16.mxu0 0
        %799 = vmatpush1.bf16.msra.mxu0 0
        %800 = vmatprep.mubr.bf16.mxu0 0
        %801 = vmatmul.mubr.bf16.gmra.mrb[0].mxu0 %v696
        %v802 = vpop.f32.mrb[0].mxu0
        %v803 = vadd.f32 %v718, %v802
        %v804 = vpop.f32.mrb[0].mxu0
        %v805 = vpop.f32.mrb[0].mxu0
        %v806 = vadd.f32 %v718, %v805
        %v807 = vpop.f32.mrb[0].mxu0
        %808 = vdwg.mxu0
        %v809 = vmax.f32 %v803, 0.0
        %v810 = vmax.f32 %v806, 0.0
        %v811 = vpack.c.bf16 %v810, %v809
        %812 = vst [vmem:[#allocation2] sm:$0xff] %v811
        %p813 = scmp.eq.s32.totalorder %s26, 1
        // Predicated region
        $region93: #{tpu_custom_call.1} parent=63 // pred_check
          %p814 = pneg %p813
        $region94: #{tpu_custom_call.1} parent=63 // pred_check_branch
          %816 = sbr.rel (%p814) target = $region96
        $region95: #{tpu_custom_call.1} parent=63 // pred_region
          %v817 = vld [vmem:[%s6] sm:$0xf]
          %v819 = vsel %vm536, %v817, 0
          %821 = vmatprep.subr.bf16.mxu0 0
          %822 = vmatpush1.bf16.msra.mxu0 %v811
          %823 = vmatprep.subr.bf16.mxu0 0
          %824 = vmatpush1.bf16.msra.mxu0 0
          %825 = vmatprep.subr.bf16.mxu0 0
          %826 = vmatpush1.bf16.msra.mxu0 0
          %827 = vmatprep.subr.bf16.mxu0 0
          %828 = vmatpush1.bf16.msra.mxu0 0
          %829 = vmatprep.subr.bf16.mxu0 0
          %830 = vmatpush1.bf16.msra.mxu0 0
          %831 = vmatprep.subr.bf16.mxu0 0
          %832 = vmatpush1.bf16.msra.mxu0 0
          %833 = vmatprep.subr.bf16.mxu0 0
          %834 = vmatpush1.bf16.msra.mxu0 0
          %835 = vmatprep.subr.bf16.mxu0 0
          %836 = vmatpush1.bf16.msra.mxu0 0
          %837 = vmatprep.subr.bf16.mxu0 0
          %838 = vmatpush1.bf16.msra.mxu0 0
          %839 = vmatprep.subr.bf16.mxu0 0
          %840 = vmatpush1.bf16.msra.mxu0 0
          %841 = vmatprep.subr.bf16.mxu0 0
          %842 = vmatpush1.bf16.msra.mxu0 0
          %843 = vmatprep.subr.bf16.mxu0 0
          %844 = vmatpush1.bf16.msra.mxu0 0
          %845 = vmatprep.subr.bf16.mxu0 0
          %846 = vmatpush1.bf16.msra.mxu0 0
          %847 = vmatprep.subr.bf16.mxu0 0
          %848 = vmatpush1.bf16.msra.mxu0 0
          %849 = vmatprep.subr.bf16.mxu0 0
          %850 = vmatpush1.bf16.msra.mxu0 0
          %851 = vmatprep.subr.bf16.mxu0 0
          %852 = vmatpush1.bf16.msra.mxu0 0
          %853 = vmatprep.mubr.bf16.mxu0 0
          %854 = vmatmul.mubr.bf16.gmra.mrb[0].mxu0 %v819
          %v855 = vpop.f32.mrb[0].mxu0
          %v856 = vadd.f32 0.0, %v855
          %v857 = vpop.f32.mrb[0].mxu0
          %v858 = vpop.f32.mrb[0].mxu0
          %v859 = vpop.f32.mrb[0].mxu0
          %860 = vdwg.mxu0
          %v861 = vpack.c.bf16 %v856, %v856
          %v862 = vld [vmem:[#allocation10] sm:$0xf]
          %v863 = vld [vmem:[#allocation10 + $0x4] sm:$0xf]
          %v864 = vld [vmem:[#allocation10 + $0x8] sm:$0xf]
          %v865 = vld [vmem:[#allocation10 + $0xc] sm:$0xf]
          %v866 = vld [vmem:[#allocation10 + $0x10] sm:$0xf]
          %v867 = vld [vmem:[#allocation10 + $0x14] sm:$0xf]
          %v868 = vld [vmem:[#allocation10 + $0x18] sm:$0xf]
          %v869 = vld [vmem:[#allocation10 + $0x1c] sm:$0xf]
          %v870 = vld [vmem:[#allocation10 + $0x20] sm:$0xf]
          %v871 = vld [vmem:[#allocation10 + $0x24] sm:$0xf]
          %v872 = vld [vmem:[#allocation10 + $0x28] sm:$0xf]
          %v873 = vld [vmem:[#allocation10 + $0x2c] sm:$0xf]
          %v874 = vld [vmem:[#allocation10 + $0x30] sm:$0xf]
          %v875 = vld [vmem:[#allocation10 + $0x34] sm:$0xf]
          %v876 = vld [vmem:[#allocation10 + $0x38] sm:$0xf]
          %v877 = vld [vmem:[#allocation10 + $0x3c] sm:$0xf]
          %v878 = vld [vmem:[%s8] sm:$0x1]
          %v880 = vlaneseq
          %v881 = vshrl.u32 %v880, 7
          %v882 = vsub.s32 0, %v881
          %v883 = vrot.slane %v878, %v882
          %v901 = vunpack.c.l.b16 %v862
          %v902 = vunpack.c.l.b16 %v863
          %v903 = vunpack.c.l.b16 %v864
          %v904 = vunpack.c.l.b16 %v865
          %v905 = vunpack.c.l.b16 %v866
          %v906 = vunpack.c.l.b16 %v867
          %v907 = vunpack.c.l.b16 %v868
          %v908 = vunpack.c.l.b16 %v869
          %v909 = vunpack.c.l.b16 %v870
          %v910 = vunpack.c.l.b16 %v871
          %v911 = vunpack.c.l.b16 %v872
          %v912 = vunpack.c.l.b16 %v873
          %v913 = vunpack.c.l.b16 %v874
          %v914 = vunpack.c.l.b16 %v875
          %v915 = vunpack.c.l.b16 %v876
          %v916 = vunpack.c.l.b16 %v877
          %v917 = vpack.c.b16 %v902, %v901
          %v918 = vpack.c.b16 %v904, %v903
          %v919 = vpack.c.b16 %v906, %v905
          %v920 = vpack.c.b16 %v908, %v907
          %v921 = vpack.c.b16 %v910, %v909
          %v922 = vpack.c.b16 %v912, %v911
          %v923 = vpack.c.b16 %v914, %v913
          %v924 = vpack.c.b16 %v916, %v915
          %933 = vmatprep.subr.bf16.mxu0 0
          %934 = vmatpush1.bf16.msra.mxu0 %v917
          %935 = vmatprep.subr.bf16.mxu0 0
          %936 = vmatpush1.bf16.msra.mxu0 %v918
          %937 = vmatprep.subr.bf16.mxu0 0
          %938 = vmatpush1.bf16.msra.mxu0 %v919
          %939 = vmatprep.subr.bf16.mxu0 0
          %940 = vmatpush1.bf16.msra.mxu0 %v920
          %941 = vmatprep.subr.bf16.mxu0 0
          %942 = vmatpush1.bf16.msra.mxu0 %v921
          %943 = vmatprep.subr.bf16.mxu0 0
          %944 = vmatpush1.bf16.msra.mxu0 %v922
          %945 = vmatprep.subr.bf16.mxu0 0
          %946 = vmatpush1.bf16.msra.mxu0 %v923
          %947 = vmatprep.subr.bf16.mxu0 0
          %948 = vmatpush1.bf16.msra.mxu0 %v924
          %949 = vmatprep.subr.bf16.mxu0 0
          %950 = vmatpush1.bf16.msra.mxu0 0
          %951 = vmatprep.subr.bf16.mxu0 0
          %952 = vmatpush1.bf16.msra.mxu0 0
          %953 = vmatprep.subr.bf16.mxu0 0
          %954 = vmatpush1.bf16.msra.mxu0 0
          %955 = vmatprep.subr.bf16.mxu0 0
          %956 = vmatpush1.bf16.msra.mxu0 0
          %957 = vmatprep.subr.bf16.mxu0 0
          %958 = vmatpush1.bf16.msra.mxu0 0
          %959 = vmatprep.subr.bf16.mxu0 0
          %960 = vmatpush1.bf16.msra.mxu0 0
          %961 = vmatprep.subr.bf16.mxu0 0
          %962 = vmatpush1.bf16.msra.mxu0 0
          %963 = vmatprep.subr.bf16.mxu0 0
          %964 = vmatpush1.bf16.msra.mxu0 0
          %965 = vmatprep.mubr.bf16.mxu0 0
          %966 = vmatmul.mubr.bf16.gmra.mrb[0].mxu0 %v861
          %v967 = vpop.f32.mrb[0].mxu0
          %v968 = vadd.f32 %v883, %v967
          %v969 = vpop.f32.mrb[0].mxu0
          %v970 = vpop.f32.mrb[0].mxu0
          %v971 = vpop.f32.mrb[0].mxu0
          %972 = vdwg.mxu0
          %v973 = vmax.f32 %v968, 0.0
          %v974 = vpack.c.bf16 %v973, %v973
          %v975 = vld [vmem:[#allocation11] sm:$0xf]
          %v976 = vld [vmem:[#allocation11 + $0x4] sm:$0xf]
          %v977 = vld [vmem:[#allocation11 + $0x8] sm:$0xf]
          %v978 = vld [vmem:[#allocation11 + $0xc] sm:$0xf]
          %v979 = vld [vmem:[#allocation11 + $0x10] sm:$0xf]
          %v980 = vld [vmem:[#allocation11 + $0x14] sm:$0xf]
          %v981 = vld [vmem:[#allocation11 + $0x18] sm:$0xf]
          %v982 = vld [vmem:[#allocation11 + $0x1c] sm:$0xf]
          %v983 = vld [vmem:[#allocation11 + $0x20] sm:$0xf]
          %v984 = vld [vmem:[#allocation11 + $0x24] sm:$0xf]
          %v985 = vld [vmem:[#allocation11 + $0x28] sm:$0xf]
          %v986 = vld [vmem:[#allocation11 + $0x2c] sm:$0xf]
          %v987 = vld [vmem:[#allocation11 + $0x30] sm:$0xf]
          %v988 = vld [vmem:[#allocation11 + $0x34] sm:$0xf]
          %v989 = vld [vmem:[#allocation11 + $0x38] sm:$0xf]
          %v990 = vld [vmem:[#allocation11 + $0x3c] sm:$0xf]
          %v991 = vld [vmem:[%s10] sm:$0x1]
          %v993 = vlaneseq
          %v994 = vshrl.u32 %v993, 7
          %v995 = vsub.s32 0, %v994
          %v996 = vrot.slane %v991, %v995
          %v1014 = vunpack.c.l.b16 %v975
          %v1015 = vunpack.c.l.b16 %v976
          %v1016 = vunpack.c.l.b16 %v977
          %v1017 = vunpack.c.l.b16 %v978
          %v1018 = vunpack.c.l.b16 %v979
          %v1019 = vunpack.c.l.b16 %v980
          %v1020 = vunpack.c.l.b16 %v981
          %v1021 = vunpack.c.l.b16 %v982
          %v1022 = vunpack.c.l.b16 %v983
          %v1023 = vunpack.c.l.b16 %v984
          %v1024 = vunpack.c.l.b16 %v985
          %v1025 = vunpack.c.l.b16 %v986
          %v1026 = vunpack.c.l.b16 %v987
          %v1027 = vunpack.c.l.b16 %v988
          %v1028 = vunpack.c.l.b16 %v989
          %v1029 = vunpack.c.l.b16 %v990
          %v1030 = vpack.c.b16 %v1015, %v1014
          %v1031 = vpack.c.b16 %v1017, %v1016
          %v1032 = vpack.c.b16 %v1019, %v1018
          %v1033 = vpack.c.b16 %v1021, %v1020
          %v1034 = vpack.c.b16 %v1023, %v1022
          %v1035 = vpack.c.b16 %v1025, %v1024
          %v1036 = vpack.c.b16 %v1027, %v1026
          %v1037 = vpack.c.b16 %v1029, %v1028
          %1046 = vmatprep.subr.bf16.mxu0 0
          %1047 = vmatpush1.bf16.msra.mxu0 %v1030
          %1048 = vmatprep.subr.bf16.mxu0 0
          %1049 = vmatpush1.bf16.msra.mxu0 %v1031
          %1050 = vmatprep.subr.bf16.mxu0 0
          %1051 = vmatpush1.bf16.msra.mxu0 %v1032
          %1052 = vmatprep.subr.bf16.mxu0 0
          %1053 = vmatpush1.bf16.msra.mxu0 %v1033
          %1054 = vmatprep.subr.bf16.mxu0 0
          %1055 = vmatpush1.bf16.msra.mxu0 %v1034
          %1056 = vmatprep.subr.bf16.mxu0 0
          %1057 = vmatpush1.bf16.msra.mxu0 %v1035
          %1058 = vmatprep.subr.bf16.mxu0 0
          %1059 = vmatpush1.bf16.msra.mxu0 %v1036
          %1060 = vmatprep.subr.bf16.mxu0 0
          %1061 = vmatpush1.bf16.msra.mxu0 %v1037
          %1062 = vmatprep.subr.bf16.mxu0 0
          %1063 = vmatpush1.bf16.msra.mxu0 0
          %1064 = vmatprep.subr.bf16.mxu0 0
          %1065 = vmatpush1.bf16.msra.mxu0 0
          %1066 = vmatprep.subr.bf16.mxu0 0
          %1067 = vmatpush1.bf16.msra.mxu0 0
          %1068 = vmatprep.subr.bf16.mxu0 0
          %1069 = vmatpush1.bf16.msra.mxu0 0
          %1070 = vmatprep.subr.bf16.mxu0 0
          %1071 = vmatpush1.bf16.msra.mxu0 0
          %1072 = vmatprep.subr.bf16.mxu0 0
          %1073 = vmatpush1.bf16.msra.mxu0 0
          %1074 = vmatprep.subr.bf16.mxu0 0
          %1075 = vmatpush1.bf16.msra.mxu0 0
          %1076 = vmatprep.subr.bf16.mxu0 0
          %1077 = vmatpush1.bf16.msra.mxu0 0
          %1078 = vmatprep.mubr.bf16.mxu0 0
          %1079 = vmatmul.mubr.bf16.gmra.mrb[0].mxu0 %v974
          %v1080 = vpop.f32.mrb[0].mxu0
          %v1081 = vadd.f32 %v996, %v1080
          %v1082 = vpop.f32.mrb[0].mxu0
          %v1083 = vpop.f32.mrb[0].mxu0
          %v1084 = vpop.f32.mrb[0].mxu0
          %1085 = vdwg.mxu0
          %1086 = vst [vmem:[#allocation13] sm:$0xff] %v1081
        $region96: #{tpu_custom_call.1} parent=63 // pred_fallthru
          _
        // Predicated region
        $region97: #{tpu_custom_call.1} parent=63 // pred_check
          %p1087 = pneg %p290
        $region98: #{tpu_custom_call.1} parent=63 // pred_check_branch
          %1089 = sbr.rel (%p1087) target = $region100
        $region99: #{tpu_custom_call.1} parent=63 // pred_region
          %s1091 = ssub.s32 128, 128
          %1092 = vsyncadd [#allocation5], %s1091
          %s1094 = sshll.u32 [#allocation13], 4
          %s1095 = int_to_ptr.vmem [resolvable:$true] %s1094
          %1097 = dma.vmem_to_hbm [thread:$0]  %s1095, 128, %s11, [#allocation5]
        $region100: #{tpu_custom_call.1} parent=63 // pred_fallthru
          _
        // Predicated region
        $region101: #{tpu_custom_call.1} parent=63 // pred_check
          %p1098 = pneg %p290
        $region102: #{tpu_custom_call.1} parent=63 // pred_check_branch
          %1100 = sbr.rel (%p1098) target = $region104
        $region103: #{tpu_custom_call.1} parent=63 // pred_region
          %1101 = dma.done [#allocation5], 128
        $region104: #{tpu_custom_call.1} parent=63 // pred_fallthru
          _
      $region64: #{tpu_custom_call.1} parent=5 // pred_fallthru
        _
      %p1102 = scmp.le.s32.totalorder 2, %s21
      // Predicated region
      $region105: #{tpu_custom_call.1} parent=5 // pred_check
        %p1103 = pneg %p1102
      $region106: #{tpu_custom_call.1} parent=5 // pred_check_branch
        %1105 = sbr.rel (%p1103) target = $region108
      $region107: #{tpu_custom_call.1} parent=5 // pred_region
        %s1106 = ssub.s32 %s21, 2
      $region108: #{tpu_custom_call.1} parent=5 // pred_fallthru
        _
    $region6: #{tpu_custom_call.1} parent=1 // loop_footer
      %s25 = sadd.s32 1, %s21
    $region7: #{tpu_custom_call.1} parent=1 // loop_footer_branch
      %20 = sbr.rel target = $region3
    $region8: #{tpu_custom_call.1} parent=1 // loop_exit
      _
    %1107 = vsyncpa [#allocation4], 1
    %s1108 = scalar_lea.sflag [#allocation4], 1
    %1109 = vsyncpa %s1108, 1
    %1110 = vsyncpa [#allocation7], 1
    %1111 = vsyncpa [#allocation12], 1
    %1112 = vsyncpa [#allocation5], 1
    %s1113 = scalar_lea.sflag [#allocation5], 1
    %1114 = vsyncpa %s1113, 1

// kernel: tpu_custom_call.1
$region0: #{tpu_custom_call.1}
  #allocation0 [shape = 'u32[]', space=smem, size = 0x4, offset = 0x4, fixed_abs, tag = 'smem constant byte address 0x4 - core index']
  #allocation1 [shape = 'u32[144,128]{1,0:T(1,128)}', space=vmem, size = 0x12000, scoped, tag = 'internal scratch']
  #allocation2 [shape = 'bf16[16,128]{1,0:T(16,128)(2,1)}', space=vmem, size = 0x1000, scoped, tag = 'scratch operand']
  %s0 = inlined_call_operand.hbm [shape: bf16[16,16], index: 0, kind: input, shape index: {}]
  %s1 = inlined_call_operand.hbm [shape: bf16[16,128], index: 1, kind: input, shape index: {}]
  %s2 = inlined_call_operand.hbm [shape: bf16[2,128,128], index: 2, kind: input, shape index: {}]
  %s3 = inlined_call_operand.vmem [shape: f32[2,1,128], index: 3, kind: input, shape index: {}]
  %s4 = inlined_call_operand.hbm [shape: bf16[2,128,128], index: 4, kind: input, shape index: {}]
  %s5 = inlined_call_operand.vmem [shape: f32[2,1,128], index: 5, kind: input, shape index: {}]
  %s6 = inlined_call_operand.vmem [shape: bf16[8,16], index: 6, kind: input, shape index: {}]
  %s7 = inlined_call_operand.hbm [shape: bf16[128,128], index: 7, kind: input, shape index: {}]
  %s8 = inlined_call_operand.vmem [shape: f32[1,128], index: 8, kind: input, shape index: {}]
  %s9 = inlined_call_operand.hbm [shape: bf16[128,128], index: 9, kind: input, shape index: {}]
  %s10 = inlined_call_operand.vmem [shape: f32[1,128], index: 10, kind: input, shape index: {}]
  %s11 = inlined_call_operand.hbm [shape: f32[8,128], index: 11, kind: output, shape index: {}]
  %s12 = sld [smem:[#allocation0]]
  $region109: #{tpu_custom_call.1} parent=0
    _
  %s14 = ssub.s32 1, %s12
  %s15 = scalar_select 0, %s14, %s12
  $region1: #{tpu_custom_call.1} parent=0
    #allocation3 [shape = 'u8[4096]{0}', space=vmem, size = 0x1000, scoped, tag = 'input window, operand 0, single buffered']
    #allocation4 [shape = 's32[2]{0}', space=sflag, size = 0x8, scoped, tag = 'scoped memory for tpu_custom_call.1']
    #allocation5 [shape = 's32[2]{0}', space=sflag, size = 0x8, scoped, tag = 'scoped memory for tpu_custom_call.1']
    #allocation6 [shape = 'u8[4096]{0}', space=vmem, size = 0x1000, scoped, tag = 'input window, operand 1, single buffered']
    #allocation7 [shape = 's32[1]{0}', space=sflag, size = 0x4, scoped, tag = 'scoped memory for tpu_custom_call.1']
    #allocation8 [shape = 'u8[65536]{0}', space=vmem, size = 0x10000, scoped, tag = 'input window, operand 2']
    #allocation9 [shape = 'u8[65536]{0}', space=vmem, size = 0x10000, scoped, tag = 'input window, operand 4']
    #allocation10 [shape = 'u8[32768]{0}', space=vmem, size = 0x8000, scoped, tag = 'input window, operand 7, single buffered']
    #allocation11 [shape = 'u8[32768]{0}', space=vmem, size = 0x8000, scoped, tag = 'input window, operand 9, single buffered']
    #allocation12 [shape = 's32[1]{0}', space=sflag, size = 0x4, scoped, tag = 'scoped memory for tpu_custom_call.1']
    #allocation13 [shape = 'u8[4096]{0}', space=vmem, size = 0x1000, scoped, tag = 'output window, operand 0, single buffered']
    %16 = vsyncpa [#allocation4], 0
    %17 = vsyncpa [#allocation7], 0
    %18 = vsyncpa [#allocation12], 0
    %19 = vsyncpa [#allocation5], 0
    loop: start=0, step=1, limit=4
    $region2: #{tpu_custom_call.1} parent=1 // loop_pre_header
      _
    $region3: #{tpu_custom_call.1} parent=1 // loop_header
      %s21 = sphi 0, %s25
      %p22 = scmp.ge.s32.totalorder %s21, 4
      %s29 = sphi 0, %s29
      %s31 = sphi 0, %s29
      %s32 = sphi 0, %s31
      %s46 = sphi 0, %s32
      %s50 = sphi 0, %s50
      %s52 = sphi 0, %s50
      %s53 = sphi 0, %s52
      %s67 = sphi 0, %s53
      %s73 = sphi 0, %s75
      %s76 = sphi 0, %s73
      %s77 = sphi 0, %s76
      %s93 = sphi 0, %s77
      %s99 = sphi 0, %s101
      %s102 = sphi 0, %s99
      %s103 = sphi 0, %s102
      %s119 = sphi 0, %s103
      %s125 = sphi 0, %s127
      %s128 = sphi 0, %s125
      %s129 = sphi 0, %s128
      %s145 = sphi 0, %s129
      %s151 = sphi 0, %s153
      %s154 = sphi 0, %s151
      %s155 = sphi 0, %s154
      %s171 = sphi 0, %s155
      %s175 = sphi 0, %s175
      %s177 = sphi 0, %s175
      %s178 = sphi 0, %s177
      %s192 = sphi 0, %s178
      %s196 = sphi 0, %s196
      %s198 = sphi 0, %s196
      %s199 = sphi 0, %s198
      %s213 = sphi 0, %s199
      %s217 = sphi 0, %s217
      %s219 = sphi 0, %s217
      %s220 = sphi 0, %s219
      %s234 = sphi 0, %s220
      %s238 = sphi 0, %s238
      %s240 = sphi 0, %s238
      %s241 = sphi 0, %s240
      %s255 = sphi 0, %s241
      %s259 = sphi 0, %s259
      %s261 = sphi 0, %s259
      %s262 = sphi 0, %s261
      %s276 = sphi 0, %s262
      %s280 = sphi 0, %s280
      %s282 = sphi 0, %s280
      %s283 = sphi 0, %s282
      %s297 = sphi 0, %s283
    $region4: #{tpu_custom_call.1} parent=1 // loop_header_branch
      %24 = sbr.rel (%p22) target = $region8
    $region5: #{tpu_custom_call.1} parent=1 // loop_body
      %s26 = ssub.s32 %s21, 1
      %s27 = ssub.s32 %s21, 2
      %s28 = sadd.s32 %s21, 1
      %s30 = sadd.s32 %s29, 1
      %p33 = scmp.eq.s32.totalorder %s21, 1
      %p34 = scmp.ne.s32.totalorder %s29, %s31
      %p35 = scmp.eq.s32.totalorder %s21, 0
      %p36 = por %p34, %p35
      %p37 = scmp.ne.s32.totalorder %s29, %s31
      %p38 = scmp.eq.s32.totalorder %s26, 1
      %p39 = por %p37, %p38
      %p40 = scmp.ne.s32.totalorder %s31, %s32
      %p41 = scmp.eq.s32.totalorder %s26, 0
      %p42 = por %p40, %p41
      %p43 = scmp.ne.s32.totalorder %s31, %s32
      %p44 = scmp.eq.s32.totalorder %s27, 1
      %p45 = por %p43, %p44
      %p47 = scmp.ne.s32.totalorder %s32, %s46
      %p48 = scmp.eq.s32.totalorder %s27, 0
      %p49 = por %p47, %p48
      %s51 = sadd.s32 %s50, 1
      %p54 = scmp.eq.s32.totalorder %s21, 1
      %p55 = scmp.ne.s32.totalorder %s50, %s52
      %p56 = scmp.eq.s32.totalorder %s21, 0
      %p57 = por %p55, %p56
      %p58 = scmp.ne.s32.totalorder %s50, %s52
      %p59 = scmp.eq.s32.totalorder %s26, 1
      %p60 = por %p58, %p59
      %p61 = scmp.ne.s32.totalorder %s52, %s53
      %p62 = scmp.eq.s32.totalorder %s26, 0
      %p63 = por %p61, %p62
      %p64 = scmp.ne.s32.totalorder %s52, %s53
      %p65 = scmp.eq.s32.totalorder %s27, 1
      %p66 = por %p64, %p65
      %p68 = scmp.ne.s32.totalorder %s53, %s67
      %p69 = scmp.eq.s32.totalorder %s27, 0
      %p70 = por %p68, %p69
      %s71 = ssub.s32 %s21, %s28
      %p72 = scmp.eq.s32.totalorder %s71, 0
      %s74 = sadd.s32 %s73, 1
      %s75 = scalar_select %p72, %s73, %s74
      %p78 = pneg %p72
      %p79 = scmp.eq.s32.totalorder %s21, 1
      %p80 = por %p78, %p79
      %p81 = scmp.ne.s32.totalorder %s73, %s76
      %p82 = scmp.eq.s32.totalorder %s21, 0
      %p83 = por %p81, %p82
      %p84 = scmp.ne.s32.totalorder %s73, %s76
      %p85 = scmp.eq.s32.totalorder %s26, 1
      %p86 = por %p84, %p85
      %p87 = scmp.ne.s32.totalorder %s76, %s77
      %p88 = scmp.eq.s32.totalorder %s26, 0
      %p89 = por %p87, %p88
      %p90 = scmp.ne.s32.totalorder %s76, %s77
      %p91 = scmp.eq.s32.totalorder %s27, 1
      %p92 = por %p90, %p91
      %p94 = scmp.ne.s32.totalorder %s77, %s93
      %p95 = scmp.eq.s32.totalorder %s27, 0
      %p96 = por %p94, %p95
      %s97 = ssub.s32 %s21, %s28
      %p98 = scmp.eq.s32.totalorder %s97, 0
      %s100 = sadd.s32 %s99, 1
      %s101 = scalar_select %p98, %s99, %s100
      %p104 = pneg %p98
      %p105 = scmp.eq.s32.totalorder %s21, 1
      %p106 = por %p104, %p105
      %p107 = scmp.ne.s32.totalorder %s99, %s102
      %p108 = scmp.eq.s32.totalorder %s21, 0
      %p109 = por %p107, %p108
      %p110 = scmp.ne.s32.totalorder %s99, %s102
      %p111 = scmp.eq.s32.totalorder %s26, 1
      %p112 = por %p110, %p111
      %p113 = scmp.ne.s32.totalorder %s102, %s103
      %p114 = scmp.eq.s32.totalorder %s26, 0
      %p115 = por %p113, %p114
      %p116 = scmp.ne.s32.totalorder %s102, %s103
      %p117 = scmp.eq.s32.totalorder %s27, 1
      %p118 = por %p116, %p117
      %p120 = scmp.ne.s32.totalorder %s103, %s119
      %p121 = scmp.eq.s32.totalorder %s27, 0
      %p122 = por %p120, %p121
      %s123 = ssub.s32 %s21, %s28
      %p124 = scmp.eq.s32.totalorder %s123, 0
      %s126 = sadd.s32 %s125, 1
      %s127 = scalar_select %p124, %s125, %s126
      %p130 = pneg %p124
      %p131 = scmp.eq.s32.totalorder %s21, 1
      %p132 = por %p130, %p131
      %p133 = scmp.ne.s32.totalorder %s125, %s128
      %p134 = scmp.eq.s32.totalorder %s21, 0
      %p135 = por %p133, %p134
      %p136 = scmp.ne.s32.totalorder %s125, %s128
      %p137 = scmp.eq.s32.totalorder %s26, 1
      %p138 = por %p136, %p137
      %p139 = scmp.ne.s32.totalorder %s128, %s129
      %p140 = scmp.eq.s32.totalorder %s26, 0
      %p141 = por %p139, %p140
      %p142 = scmp.ne.s32.totalorder %s128, %s129
      %p143 = scmp.eq.s32.totalorder %s27, 1
      %p144 = por %p142, %p143
      %p146 = scmp.ne.s32.totalorder %s129, %s145
      %p147 = scmp.eq.s32.totalorder %s27, 0
      %p148 = por %p146, %p147
      %s149 = ssub.s32 %s21, %s28
      %p150 = scmp.eq.s32.totalorder %s149, 0
      %s152 = sadd.s32 %s151, 1
      %s153 = scalar_select %p150, %s151, %s152
      %p156 = pneg %p150
      %p157 = scmp.eq.s32.totalorder %s21, 1
      %p158 = por %p156, %p157
      %p159 = scmp.ne.s32.totalorder %s151, %s154
      %p160 = scmp.eq.s32.totalorder %s21, 0
      %p161 = por %p159, %p160
      %p162 = scmp.ne.s32.totalorder %s151, %s154
      %p163 = scmp.eq.s32.totalorder %s26, 1
      %p164 = por %p162, %p163
      %p165 = scmp.ne.s32.totalorder %s154, %s155
      %p166 = scmp.eq.s32.totalorder %s26, 0
      %p167 = por %p165, %p166
      %p168 = scmp.ne.s32.totalorder %s154, %s155
      %p169 = scmp.eq.s32.totalorder %s27, 1
      %p170 = por %p168, %p169
      %p172 = scmp.ne.s32.totalorder %s155, %s171
      %p173 = scmp.eq.s32.totalorder %s27, 0
      %p174 = por %p172, %p173
      %s176 = sadd.s32 %s175, 1
      %p179 = scmp.eq.s32.totalorder %s21, 1
      %p180 = scmp.ne.s32.totalorder %s175, %s177
      %p181 = scmp.eq.s32.totalorder %s21, 0
      %p182 = por %p180, %p181
      %p183 = scmp.ne.s32.totalorder %s175, %s177
      %p184 = scmp.eq.s32.totalorder %s26, 1
      %p185 = por %p183, %p184
      %p186 = scmp.ne.s32.totalorder %s177, %s178
      %p187 = scmp.eq.s32.totalorder %s26, 0
      %p188 = por %p186, %p187
      %p189 = scmp.ne.s32.totalorder %s177, %s178
      %p190 = scmp.eq.s32.totalorder %s27, 1
      %p191 = por %p189, %p190
      %p193 = scmp.ne.s32.totalorder %s178, %s192
      %p194 = scmp.eq.s32.totalorder %s27, 0
      %p195 = por %p193, %p194
      %s197 = sadd.s32 %s196, 1
      %p200 = scmp.eq.s32.totalorder %s21, 1
      %p201 = scmp.ne.s32.totalorder %s196, %s198
      %p202 = scmp.eq.s32.totalorder %s21, 0
      %p203 = por %p201, %p202
      %p204 = scmp.ne.s32.totalorder %s196, %s198
      %p205 = scmp.eq.s32.totalorder %s26, 1
      %p206 = por %p204, %p205
      %p207 = scmp.ne.s32.totalorder %s198, %s199
      %p208 = scmp.eq.s32.totalorder %s26, 0
      %p209 = por %p207, %p208
      %p210 = scmp.ne.s32.totalorder %s198, %s199
      %p211 = scmp.eq.s32.totalorder %s27, 1
      %p212 = por %p210, %p211
      %p214 = scmp.ne.s32.totalorder %s199, %s213
      %p215 = scmp.eq.s32.totalorder %s27, 0
      %p216 = por %p214, %p215
      %s218 = sadd.s32 %s217, 1
      %p221 = scmp.eq.s32.totalorder %s21, 1
      %p222 = scmp.ne.s32.totalorder %s217, %s219
      %p223 = scmp.eq.s32.totalorder %s21, 0
      %p224 = por %p222, %p223
      %p225 = scmp.ne.s32.totalorder %s217, %s219
      %p226 = scmp.eq.s32.totalorder %s26, 1
      %p227 = por %p225, %p226
      %p228 = scmp.ne.s32.totalorder %s219, %s220
      %p229 = scmp.eq.s32.totalorder %s26, 0
      %p230 = por %p228, %p229
      %p231 = scmp.ne.s32.totalorder %s219, %s220
      %p232 = scmp.eq.s32.totalorder %s27, 1
      %p233 = por %p231, %p232
      %p235 = scmp.ne.s32.totalorder %s220, %s234
      %p236 = scmp.eq.s32.totalorder %s27, 0
      %p237 = por %p235, %p236
      %s239 = sadd.s32 %s238, 1
      %p242 = scmp.eq.s32.totalorder %s21, 1
      %p243 = scmp.ne.s32.totalorder %s238, %s240
      %p244 = scmp.eq.s32.totalorder %s21, 0
      %p245 = por %p243, %p244
      %p246 = scmp.ne.s32.totalorder %s238, %s240
      %p247 = scmp.eq.s32.totalorder %s26, 1
      %p248 = por %p246, %p247
      %p249 = scmp.ne.s32.totalorder %s240, %s241
      %p250 = scmp.eq.s32.totalorder %s26, 0
      %p251 = por %p249, %p250
      %p252 = scmp.ne.s32.totalorder %s240, %s241
      %p253 = scmp.eq.s32.totalorder %s27, 1
      %p254 = por %p252, %p253
      %p256 = scmp.ne.s32.totalorder %s241, %s255
      %p257 = scmp.eq.s32.totalorder %s27, 0
      %p258 = por %p256, %p257
      %s260 = sadd.s32 %s259, 1
      %p263 = scmp.eq.s32.totalorder %s21, 1
      %p264 = scmp.ne.s32.totalorder %s259, %s261
      %p265 = scmp.eq.s32.totalorder %s21, 0
      %p266 = por %p264, %p265
      %p267 = scmp.ne.s32.totalorder %s259, %s261
      %p268 = scmp.eq.s32.totalorder %s26, 1
      %p269 = por %p267, %p268
      %p270 = scmp.ne.s32.totalorder %s261, %s262
      %p271 = scmp.eq.s32.totalorder %s26, 0
      %p272 = por %p270, %p271
      %p273 = scmp.ne.s32.totalorder %s261, %s262
      %p274 = scmp.eq.s32.totalorder %s27, 1
      %p275 = por %p273, %p274
      %p277 = scmp.ne.s32.totalorder %s262, %s276
      %p278 = scmp.eq.s32.totalorder %s27, 0
      %p279 = por %p277, %p278
      %s281 = sadd.s32 %s280, 1
      %p284 = scmp.eq.s32.totalorder %s21, 1
      %p285 = scmp.ne.s32.totalorder %s280, %s282
      %p286 = scmp.eq.s32.totalorder %s21, 0
      %p287 = por %p285, %p286
      %p288 = scmp.ne.s32.totalorder %s280, %s282
      %p289 = scmp.eq.s32.totalorder %s26, 1
      %p290 = por %p288, %p289
      %p291 = scmp.ne.s32.totalorder %s282, %s283
      %p292 = scmp.eq.s32.totalorder %s26, 0
      %p293 = por %p291, %p292
      %p294 = scmp.ne.s32.totalorder %s282, %s283
      %p295 = scmp.eq.s32.totalorder %s27, 1
      %p296 = por %p294, %p295
      %p298 = scmp.ne.s32.totalorder %s283, %s297
      %p299 = scmp.eq.s32.totalorder %s27, 0
      %p300 = por %p298, %p299
      %p301 = scmp.le.s32.totalorder 1, %s21
      %p302 = scmp.lt.s32.totalorder %s21, 3
      %p303 = pnand %p301, %p302
      %p304 = pneg %p303
      // Predicated region
      $region9: #{tpu_custom_call.1} parent=5 // pred_check
        _
      $region10: #{tpu_custom_call.1} parent=5 // pred_check_branch
        %306 = sbr.rel (%p303) target = $region12
      $region11: #{tpu_custom_call.1} parent=5 // pred_region
        %s307 = ssub.s32 %s21, 1
        // Predicated region
        $region13: #{tpu_custom_call.1} parent=11 // pred_check
          %p308 = pneg %p42
        $region14: #{tpu_custom_call.1} parent=11 // pred_check_branch
          %310 = sbr.rel (%p308) target = $region16
        $region15: #{tpu_custom_call.1} parent=11 // pred_region
          %s312 = ssub.s32 128, 128
          %313 = vsyncadd [#allocation4], %s312
          %s314 = sshll.u32 [#allocation3], 4
          %s315 = int_to_ptr.vmem [resolvable:$true] %s314
          %320 = dma.hbm_to_vmem [thread:$0]  %s0, 128, %s315, [#allocation4], 64, 64, 4
        $region16: #{tpu_custom_call.1} parent=11 // pred_fallthru
          _
        // Predicated region
        $region17: #{tpu_custom_call.1} parent=11 // pred_check
          %p321 = pneg %p63
        $region18: #{tpu_custom_call.1} parent=11 // pred_check_branch
          %323 = sbr.rel (%p321) target = $region20
        $region19: #{tpu_custom_call.1} parent=11 // pred_region
          %s325 = ssub.s32 128, 128
          %326 = vsyncadd [#allocation7], %s325
          %s327 = sshll.u32 [#allocation6], 4
          %s328 = int_to_ptr.vmem [resolvable:$true] %s327
          %333 = dma.hbm_to_vmem [thread:$0]  %s1, 128, %s328, [#allocation7], 64, 64, 4
        $region20: #{tpu_custom_call.1} parent=11 // pred_fallthru
          _
        // Predicated region
        $region21: #{tpu_custom_call.1} parent=11 // pred_check
          %p334 = pneg %p188
        $region22: #{tpu_custom_call.1} parent=11 // pred_check_branch
          %336 = sbr.rel (%p334) target = $region24
        $region23: #{tpu_custom_call.1} parent=11 // pred_region
          _
        $region24: #{tpu_custom_call.1} parent=11 // pred_fallthru
          _
        // Predicated region
        $region25: #{tpu_custom_call.1} parent=11 // pred_check
          %p337 = pneg %p209
        $region26: #{tpu_custom_call.1} parent=11 // pred_check_branch
          %339 = sbr.rel (%p337) target = $region28
        $region27: #{tpu_custom_call.1} parent=11 // pred_region
          %s341 = ssub.s32 1024, 1024
          %342 = vsyncadd [#allocation7], %s341
          %s343 = sshll.u32 [#allocation10], 4
          %s344 = int_to_ptr.vmem [resolvable:$true] %s343
          %349 = dma.hbm_to_vmem [thread:$0]  %s7, 1024, %s344, [#allocation7], 64, 64, 4
        $region28: #{tpu_custom_call.1} parent=11 // pred_fallthru
          _
        // Predicated region
        $region29: #{tpu_custom_call.1} parent=11 // pred_check
          %p350 = pneg %p230
        $region30: #{tpu_custom_call.1} parent=11 // pred_check_branch
          %352 = sbr.rel (%p350) target = $region32
        $region31: #{tpu_custom_call.1} parent=11 // pred_region
          _
        $region32: #{tpu_custom_call.1} parent=11 // pred_fallthru
          _
        // Predicated region
        $region33: #{tpu_custom_call.1} parent=11 // pred_check
          %p353 = pneg %p251
        $region34: #{tpu_custom_call.1} parent=11 // pred_check_branch
          %355 = sbr.rel (%p353) target = $region36
        $region35: #{tpu_custom_call.1} parent=11 // pred_region
          %s357 = ssub.s32 1024, 1024
          %358 = vsyncadd [#allocation12], %s357
          %s359 = sshll.u32 [#allocation11], 4
          %s360 = int_to_ptr.vmem [resolvable:$true] %s359
          %365 = dma.hbm_to_vmem [thread:$0]  %s9, 1024, %s360, [#allocation12], 64, 64, 4
        $region36: #{tpu_custom_call.1} parent=11 // pred_fallthru
          _
        // Predicated region
        $region37: #{tpu_custom_call.1} parent=11 // pred_check
          %p366 = pneg %p272
        $region38: #{tpu_custom_call.1} parent=11 // pred_check_branch
          %368 = sbr.rel (%p366) target = $region40
        $region39: #{tpu_custom_call.1} parent=11 // pred_region
          _
        $region40: #{tpu_custom_call.1} parent=11 // pred_fallthru
          _
      $region12: #{tpu_custom_call.1} parent=5 // pred_fallthru
        _
      %p369 = scmp.lt.s32.totalorder %s21, 2
      // Predicated region
      $region41: #{tpu_custom_call.1} parent=5 // pred_check
        %p370 = pneg %p369
      $region42: #{tpu_custom_call.1} parent=5 // pred_check_branch
        %372 = sbr.rel (%p370) target = $region44
      $region43: #{tpu_custom_call.1} parent=5 // pred_region
        // Predicated region
        $region45: #{tpu_custom_call.1} parent=43 // pred_check
          %p373 = pneg %p83
        $region46: #{tpu_custom_call.1} parent=43 // pred_check_branch
          %375 = sbr.rel (%p373) target = $region48
        $region47: #{tpu_custom_call.1} parent=43 // pred_region
          %s376 = sand.u32 %s21, 1
          %s377 = scalar_lea.sflag [#allocation4], %s376
          %s378 = sand.u32 %s73, 1
          %s379 = smul.addr %s378, 64
          %s380 = scalar_lea.vmem [#allocation8], %s379
          %s382 = ssub.s32 1024, 1024
          %383 = vsyncadd %s377, %s382
          %s384 = smul.addr %s21, 16
          %s385 = smul.addr %s384, 64
          %s386 = scalar_lea.hbm %s2, %s385
          %s387 = sshll.u32 %s380, 4
          %s388 = int_to_ptr.vmem [resolvable:$true] %s387
          %393 = dma.hbm_to_vmem [thread:$0]  %s386, 1024, %s388, %s377, 64, 64, 4
        $region48: #{tpu_custom_call.1} parent=43 // pred_fallthru
          _
        // Predicated region
        $region49: #{tpu_custom_call.1} parent=43 // pred_check
          %p394 = pneg %p109
        $region50: #{tpu_custom_call.1} parent=43 // pred_check_branch
          %396 = sbr.rel (%p394) target = $region52
        $region51: #{tpu_custom_call.1} parent=43 // pred_region
          %p397 = scmp.lt.s32.totalorder %s21, 1
          %s398 = scalar_select %p397, %s21, 1
          %s399 = scalar_lea.vmem %s3, %s398
        $region52: #{tpu_custom_call.1} parent=43 // pred_fallthru
          _
        // Predicated region
        $region53: #{tpu_custom_call.1} parent=43 // pred_check
          %p400 = pneg %p135
        $region54: #{tpu_custom_call.1} parent=43 // pred_check_branch
          %402 = sbr.rel (%p400) target = $region56
        $region55: #{tpu_custom_call.1} parent=43 // pred_region
          %s403 = sand.u32 %s21, 1
          %s404 = scalar_lea.sflag [#allocation4], %s403
          %s405 = sand.u32 %s125, 1
          %s406 = smul.addr %s405, 64
          %s407 = scalar_lea.vmem [#allocation9], %s406
          %s409 = ssub.s32 1024, 1024
          %410 = vsyncadd %s404, %s409
          %s411 = smul.addr %s21, 16
          %s412 = smul.addr %s411, 64
          %s413 = scalar_lea.hbm %s4, %s412
          %s414 = sshll.u32 %s407, 4
          %s415 = int_to_ptr.vmem [resolvable:$true] %s414
          %420 = dma.hbm_to_vmem [thread:$0]  %s413, 1024, %s415, %s404, 64, 64, 4
        $region56: #{tpu_custom_call.1} parent=43 // pred_fallthru
          _
        // Predicated region
        $region57: #{tpu_custom_call.1} parent=43 // pred_check
          %p421 = pneg %p161
        $region58: #{tpu_custom_call.1} parent=43 // pred_check_branch
          %423 = sbr.rel (%p421) target = $region60
        $region59: #{tpu_custom_call.1} parent=43 // pred_region
          %p424 = scmp.lt.s32.totalorder %s21, 1
          %s425 = scalar_select %p424, %s21, 1
          %s426 = scalar_lea.vmem %s5, %s425
        $region60: #{tpu_custom_call.1} parent=43 // pred_fallthru
          _
      $region44: #{tpu_custom_call.1} parent=5 // pred_fallthru
        _
      %p427 = scmp.le.s32.totalorder 1, %s21
      %p428 = scmp.lt.s32.totalorder %s21, 3
      %p429 = pnand %p427, %p428
      %p430 = pneg %p429
      // Predicated region
      $region61: #{tpu_custom_call.1} parent=5 // pred_check
        _
      $region62: #{tpu_custom_call.1} parent=5 // pred_check_branch
        %432 = sbr.rel (%p429) target = $region64
      $region63: #{tpu_custom_call.1} parent=5 // pred_region
        %s433 = ssub.s32 %s21, 1
        // Predicated region
        $region65: #{tpu_custom_call.1} parent=63 // pred_check
          %p434 = pneg %p42
        $region66: #{tpu_custom_call.1} parent=63 // pred_check_branch
          %436 = sbr.rel (%p434) target = $region68
        $region67: #{tpu_custom_call.1} parent=63 // pred_region
          %437 = dma.done [#allocation4], 128
        $region68: #{tpu_custom_call.1} parent=63 // pred_fallthru
          _
        // Predicated region
        $region69: #{tpu_custom_call.1} parent=63 // pred_check
          %p438 = pneg %p63
        $region70: #{tpu_custom_call.1} parent=63 // pred_check_branch
          %440 = sbr.rel (%p438) target = $region72
        $region71: #{tpu_custom_call.1} parent=63 // pred_region
          %441 = dma.done [#allocation7], 128
        $region72: #{tpu_custom_call.1} parent=63 // pred_fallthru
          _
        %s442 = sand.u32 %s26, 1
        %s443 = scalar_lea.sflag [#allocation4], %s442
        %s444 = sand.u32 %s76, 1
        %s445 = smul.addr %s444, 64
        %s446 = scalar_lea.vmem [#allocation8], %s445
        // Predicated region
        $region73: #{tpu_custom_call.1} parent=63 // pred_check
          %p447 = pneg %p89
        $region74: #{tpu_custom_call.1} parent=63 // pred_check_branch
          %449 = sbr.rel (%p447) target = $region76
        $region75: #{tpu_custom_call.1} parent=63 // pred_region
          %450 = dma.done %s443, 1024
        $region76: #{tpu_custom_call.1} parent=63 // pred_fallthru
          _
        %s451 = sand.u32 %s26, 1
        %s452 = scalar_lea.sflag [#allocation4], %s451
        %s453 = sand.u32 %s128, 1
        %s454 = smul.addr %s453, 64
        %s455 = scalar_lea.vmem [#allocation9], %s454
        // Predicated region
        $region77: #{tpu_custom_call.1} parent=63 // pred_check
          %p456 = pneg %p141
        $region78: #{tpu_custom_call.1} parent=63 // pred_check_branch
          %458 = sbr.rel (%p456) target = $region80
        $region79: #{tpu_custom_call.1} parent=63 // pred_region
          %459 = dma.done %s452, 1024
        $region80: #{tpu_custom_call.1} parent=63 // pred_fallthru
          _
        // Predicated region
        $region81: #{tpu_custom_call.1} parent=63 // pred_check
          %p460 = pneg %p209
        $region82: #{tpu_custom_call.1} parent=63 // pred_check_branch
          %462 = sbr.rel (%p460) target = $region84
        $region83: #{tpu_custom_call.1} parent=63 // pred_region
          %463 = dma.done [#allocation7], 1024
        $region84: #{tpu_custom_call.1} parent=63 // pred_fallthru
          _
        // Predicated region
        $region85: #{tpu_custom_call.1} parent=63 // pred_check
          %p464 = pneg %p251
        $region86: #{tpu_custom_call.1} parent=63 // pred_check_branch
          %466 = sbr.rel (%p464) target = $region88
        $region87: #{tpu_custom_call.1} parent=63 // pred_region
          %467 = dma.done [#allocation12], 1024
        $region88: #{tpu_custom_call.1} parent=63 // pred_fallthru
          _
        %p468 = pneg %p42
        %p469 = pneg %p39
        %p470 = pneg %p63
        %p471 = pneg %p60
        %s472 = sand.u32 %s26, 1
        %s473 = scalar_lea.sflag [#allocation4], %s472
        %s474 = sand.u32 %s76, 1
        %s475 = smul.addr %s474, 64
        %s476 = scalar_lea.vmem [#allocation8], %s475
        %p477 = pneg %p89
        %p478 = pneg %p86
        %p479 = scmp.lt.s32.totalorder %s26, 1
        %s480 = scalar_select %p479, %s26, 1
        %s481 = scalar_lea.vmem %s3, %s480
        %p482 = pneg %p115
        %p483 = pneg %p112
        %s484 = sand.u32 %s26, 1
        %s485 = scalar_lea.sflag [#allocation4], %s484
        %s486 = sand.u32 %s128, 1
        %s487 = smul.addr %s486, 64
        %s488 = scalar_lea.vmem [#allocation9], %s487
        %p489 = pneg %p141
        %p490 = pneg %p138
        %p491 = scmp.lt.s32.totalorder %s26, 1
        %s492 = scalar_select %p491, %s26, 1
        %s493 = scalar_lea.vmem %s5, %s492
        %p494 = pneg %p167
        %p495 = pneg %p164
        %p496 = pneg %p188
        %p497 = pneg %p185
        %p498 = pneg %p209
        %p499 = pneg %p206
        %p500 = pneg %p230
        %p501 = pneg %p227
        %p502 = pneg %p251
        %p503 = pneg %p248
        %p504 = pneg %p272
        %p505 = pneg %p269
        %p506 = pneg %p293
        %p507 = pneg %p290
        %p508 = scmp.lt.s32.totalorder %s26, 1
        %s509 = scalar_select %p508, %s26, 1
        %s510 = scalar_lea.vmem %s3, %s509
        %p511 = scmp.lt.s32.totalorder %s26, 1
        %s512 = scalar_select %p511, %s26, 1
        %s513 = scalar_lea.vmem %s5, %s512
        %p515 = scmp.eq.s32.totalorder %s26, 0
        // Predicated region
        $region89: #{tpu_custom_call.1} parent=63 // pred_check
          %p516 = pneg %p515
        $region90: #{tpu_custom_call.1} parent=63 // pred_check_branch
          %518 = sbr.rel (%p516) target = $region92
        $region91: #{tpu_custom_call.1} parent=63 // pred_region
          %v519 = vld [vmem:[#allocation6] sm:$0xf]
          %v520 = vld [vmem:[#allocation6 + $0x4] sm:$0xf]
          %v523 = vunpack.c.l.b16 %v519
          %v524 = vunpack.c.l.b16 %v520
          %v525 = vpack.c.b16 %v524, %v523
          %527 = vst [vmem:[#allocation2] sm:$0xff] %v525
        $region92: #{tpu_custom_call.1} parent=63 // pred_fallthru
          _
        %v528 = vld [vmem:[#allocation3] sm:$0xf]
        %v529 = vld [vmem:[#allocation3 + $0x4] sm:$0xf]
        %v530 = vld [vmem:[#allocation2] sm:$0xff]
        %v533 = vunpack.c.l.b16 %v528
        %v534 = vunpack.c.l.b16 %v529
        %v535 = vpack.c.b16 %v534, %v533
        %vm536 = vcmask 130048
        %v538 = vsel %vm536, %v535, 0
        %540 = vmatprep.subr.bf16.mxu0 0
        %541 = vmatpush1.bf16.msra.mxu0 %v530
        %542 = vmatprep.subr.bf16.mxu0 0
        %543 = vmatpush1.bf16.msra.mxu0 0
        %544 = vmatprep.subr.bf16.mxu0 0
        %545 = vmatpush1.bf16.msra.mxu0 0
        %546 = vmatprep.subr.bf16.mxu0 0
        %547 = vmatpush1.bf16.msra.mxu0 0
        %548 = vmatprep.subr.bf16.mxu0 0
        %549 = vmatpush1.bf16.msra.mxu0 0
        %550 = vmatprep.subr.bf16.mxu0 0
        %551 = vmatpush1.bf16.msra.mxu0 0
        %552 = vmatprep.subr.bf16.mxu0 0
        %553 = vmatpush1.bf16.msra.mxu0 0
        %554 = vmatprep.subr.bf16.mxu0 0
        %555 = vmatpush1.bf16.msra.mxu0 0
        %556 = vmatprep.subr.bf16.mxu0 0
        %557 = vmatpush1.bf16.msra.mxu0 0
        %558 = vmatprep.subr.bf16.mxu0 0
        %559 = vmatpush1.bf16.msra.mxu0 0
        %560 = vmatprep.subr.bf16.mxu0 0
        %561 = vmatpush1.bf16.msra.mxu0 0
        %562 = vmatprep.subr.bf16.mxu0 0
        %563 = vmatpush1.bf16.msra.mxu0 0
        %564 = vmatprep.subr.bf16.mxu0 0
        %565 = vmatpush1.bf16.msra.mxu0 0
        %566 = vmatprep.subr.bf16.mxu0 0
        %567 = vmatpush1.bf16.msra.mxu0 0
        %568 = vmatprep.subr.bf16.mxu0 0
        %569 = vmatpush1.bf16.msra.mxu0 0
        %570 = vmatprep.subr.bf16.mxu0 0
        %571 = vmatpush1.bf16.msra.mxu0 0
        %572 = vmatprep.mubr.bf16.mxu0 0
        %573 = vmatmul.mubr.bf16.gmra.mrb[0].mxu0 %v538
        %v574 = vpop.f32.mrb[0].mxu0
        %v575 = vadd.f32 0.0, %v574
        %v576 = vpop.f32.mrb[0].mxu0
        %v577 = vpop.f32.mrb[0].mxu0
        %v578 = vadd.f32 0.0, %v577
        %v579 = vpop.f32.mrb[0].mxu0
        %580 = vdwg.mxu0
        %v581 = vpack.c.bf16 %v578, %v575
        %v582 = vld [vmem:[%s446] sm:$0xf]
        %v583 = vld [vmem:[%s446 + $0x4] sm:$0xf]
        %v584 = vld [vmem:[%s446 + $0x8] sm:$0xf]
        %v585 = vld [vmem:[%s446 + $0xc] sm:$0xf]
        %v586 = vld [vmem:[%s446 + $0x10] sm:$0xf]
        %v587 = vld [vmem:[%s446 + $0x14] sm:$0xf]
        %v588 = vld [vmem:[%s446 + $0x18] sm:$0xf]
        %v589 = vld [vmem:[%s446 + $0x1c] sm:$0xf]
        %v590 = vld [vmem:[%s446 + $0x20] sm:$0xf]
        %v591 = vld [vmem:[%s446 + $0x24] sm:$0xf]
        %v592 = vld [vmem:[%s446 + $0x28] sm:$0xf]
        %v593 = vld [vmem:[%s446 + $0x2c] sm:$0xf]
        %v594 = vld [vmem:[%s446 + $0x30] sm:$0xf]
        %v595 = vld [vmem:[%s446 + $0x34] sm:$0xf]
        %v596 = vld [vmem:[%s446 + $0x38] sm:$0xf]
        %v597 = vld [vmem:[%s446 + $0x3c] sm:$0xf]
        %v598 = vld [vmem:[%s510] sm:$0x1]
        %v600 = vlaneseq
        %v601 = vshrl.u32 %v600, 7
        %v602 = vsub.s32 0, %v601
        %v603 = vrot.slane %v598, %v602
        %v621 = vunpack.c.l.b16 %v582
        %v622 = vunpack.c.l.b16 %v583
        %v623 = vunpack.c.l.b16 %v584
        %v624 = vunpack.c.l.b16 %v585
        %v625 = vunpack.c.l.b16 %v586
        %v626 = vunpack.c.l.b16 %v587
        %v627 = vunpack.c.l.b16 %v588
        %v628 = vunpack.c.l.b16 %v589
        %v629 = vunpack.c.l.b16 %v590
        %v630 = vunpack.c.l.b16 %v591
        %v631 = vunpack.c.l.b16 %v592
        %v632 = vunpack.c.l.b16 %v593
        %v633 = vunpack.c.l.b16 %v594
        %v634 = vunpack.c.l.b16 %v595
        %v635 = vunpack.c.l.b16 %v596
        %v636 = vunpack.c.l.b16 %v597
        %v637 = vpack.c.b16 %v622, %v621
        %v638 = vpack.c.b16 %v624, %v623
        %v639 = vpack.c.b16 %v626, %v625
        %v640 = vpack.c.b16 %v628, %v627
        %v641 = vpack.c.b16 %v630, %v629
        %v642 = vpack.c.b16 %v632, %v631
        %v643 = vpack.c.b16 %v634, %v633
        %v644 = vpack.c.b16 %v636, %v635
        %653 = vmatprep.subr.bf16.mxu0 0
        %654 = vmatpush1.bf16.msra.mxu0 %v637
        %655 = vmatprep.subr.bf16.mxu0 0
        %656 = vmatpush1.bf16.msra.mxu0 %v638
        %657 = vmatprep.subr.bf16.mxu0 0
        %658 = vmatpush1.bf16.msra.mxu0 %v639
        %659 = vmatprep.subr.bf16.mxu0 0
        %660 = vmatpush1.bf16.msra.mxu0 %v640
        %661 = vmatprep.subr.bf16.mxu0 0
        %662 = vmatpush1.bf16.msra.mxu0 %v641
        %663 = vmatprep.subr.bf16.mxu0 0
        %664 = vmatpush1.bf16.msra.mxu0 %v642
        %665 = vmatprep.subr.bf16.mxu0 0
        %666 = vmatpush1.bf16.msra.mxu0 %v643
        %667 = vmatprep.subr.bf16.mxu0 0
        %668 = vmatpush1.bf16.msra.mxu0 %v644
        %669 = vmatprep.subr.bf16.mxu0 0
        %670 = vmatpush1.bf16.msra.mxu0 0
        %671 = vmatprep.subr.bf16.mxu0 0
        %672 = vmatpush1.bf16.msra.mxu0 0
        %673 = vmatprep.subr.bf16.mxu0 0
        %674 = vmatpush1.bf16.msra.mxu0 0
        %675 = vmatprep.subr.bf16.mxu0 0
        %676 = vmatpush1.bf16.msra.mxu0 0
        %677 = vmatprep.subr.bf16.mxu0 0
        %678 = vmatpush1.bf16.msra.mxu0 0
        %679 = vmatprep.subr.bf16.mxu0 0
        %680 = vmatpush1.bf16.msra.mxu0 0
        %681 = vmatprep.subr.bf16.mxu0 0
        %682 = vmatpush1.bf16.msra.mxu0 0
        %683 = vmatprep.subr.bf16.mxu0 0
        %684 = vmatpush1.bf16.msra.mxu0 0
        %685 = vmatprep.mubr.bf16.mxu0 0
        %686 = vmatmul.mubr.bf16.gmra.mrb[0].mxu0 %v581
        %v687 = vpop.f32.mrb[0].mxu0
        %v688 = vadd.f32 %v603, %v687
        %v689 = vpop.f32.mrb[0].mxu0
        %v690 = vpop.f32.mrb[0].mxu0
        %v691 = vadd.f32 %v603, %v690
        %v692 = vpop.f32.mrb[0].mxu0
        %693 = vdwg.mxu0
        %v694 = vmax.f32 %v688, 0.0
        %v695 = vmax.f32 %v691, 0.0
        %v696 = vpack.c.bf16 %v695, %v694
        %v697 = vld [vmem:[%s455] sm:$0xf]
        %v698 = vld [vmem:[%s455 + $0x4] sm:$0xf]
        %v699 = vld [vmem:[%s455 + $0x8] sm:$0xf]
        %v700 = vld [vmem:[%s455 + $0xc] sm:$0xf]
        %v701 = vld [vmem:[%s455 + $0x10] sm:$0xf]
        %v702 = vld [vmem:[%s455 + $0x14] sm:$0xf]
        %v703 = vld [vmem:[%s455 + $0x18] sm:$0xf]
        %v704 = vld [vmem:[%s455 + $0x1c] sm:$0xf]
        %v705 = vld [vmem:[%s455 + $0x20] sm:$0xf]
        %v706 = vld [vmem:[%s455 + $0x24] sm:$0xf]
        %v707 = vld [vmem:[%s455 + $0x28] sm:$0xf]
        %v708 = vld [vmem:[%s455 + $0x2c] sm:$0xf]
        %v709 = vld [vmem:[%s455 + $0x30] sm:$0xf]
        %v710 = vld [vmem:[%s455 + $0x34] sm:$0xf]
        %v711 = vld [vmem:[%s455 + $0x38] sm:$0xf]
        %v712 = vld [vmem:[%s455 + $0x3c] sm:$0xf]
        %v713 = vld [vmem:[%s513] sm:$0x1]
        %v715 = vlaneseq
        %v716 = vshrl.u32 %v715, 7
        %v717 = vsub.s32 0, %v716
        %v718 = vrot.slane %v713, %v717
        %v736 = vunpack.c.l.b16 %v697
        %v737 = vunpack.c.l.b16 %v698
        %v738 = vunpack.c.l.b16 %v699
        %v739 = vunpack.c.l.b16 %v700
        %v740 = vunpack.c.l.b16 %v701
        %v741 = vunpack.c.l.b16 %v702
        %v742 = vunpack.c.l.b16 %v703
        %v743 = vunpack.c.l.b16 %v704
        %v744 = vunpack.c.l.b16 %v705
        %v745 = vunpack.c.l.b16 %v706
        %v746 = vunpack.c.l.b16 %v707
        %v747 = vunpack.c.l.b16 %v708
        %v748 = vunpack.c.l.b16 %v709
        %v749 = vunpack.c.l.b16 %v710
        %v750 = vunpack.c.l.b16 %v711
        %v751 = vunpack.c.l.b16 %v712
        %v752 = vpack.c.b16 %v737, %v736
        %v753 = vpack.c.b16 %v739, %v738
        %v754 = vpack.c.b16 %v741, %v740
        %v755 = vpack.c.b16 %v743, %v742
        %v756 = vpack.c.b16 %v745, %v744
        %v757 = vpack.c.b16 %v747, %v746
        %v758 = vpack.c.b16 %v749, %v748
        %v759 = vpack.c.b16 %v751, %v750
        %768 = vmatprep.subr.bf16.mxu0 0
        %769 = vmatpush1.bf16.msra.mxu0 %v752
        %770 = vmatprep.subr.bf16.mxu0 0
        %771 = vmatpush1.bf16.msra.mxu0 %v753
        %772 = vmatprep.subr.bf16.mxu0 0
        %773 = vmatpush1.bf16.msra.mxu0 %v754
        %774 = vmatprep.subr.bf16.mxu0 0
        %775 = vmatpush1.bf16.msra.mxu0 %v755
        %776 = vmatprep.subr.bf16.mxu0 0
        %777 = vmatpush1.bf16.msra.mxu0 %v756
        %778 = vmatprep.subr.bf16.mxu0 0
        %779 = vmatpush1.bf16.msra.mxu0 %v757
        %780 = vmatprep.subr.bf16.mxu0 0
        %781 = vmatpush1.bf16.msra.mxu0 %v758
        %782 = vmatprep.subr.bf16.mxu0 0
        %783 = vmatpush1.bf16.msra.mxu0 %v759
        %784 = vmatprep.subr.bf16.mxu0 0
        %785 = vmatpush1.bf16.msra.mxu0 0
        %786 = vmatprep.subr.bf16.mxu0 0
        %787 = vmatpush1.bf16.msra.mxu0 0
        %788 = vmatprep.subr.bf16.mxu0 0
        %789 = vmatpush1.bf16.msra.mxu0 0
        %790 = vmatprep.subr.bf16.mxu0 0
        %791 = vmatpush1.bf16.msra.mxu0 0
        %792 = vmatprep.subr.bf16.mxu0 0
        %793 = vmatpush1.bf16.msra.mxu0 0
        %794 = vmatprep.subr.bf16.mxu0 0
        %795 = vmatpush1.bf16.msra.mxu0 0
        %796 = vmatprep.subr.bf16.mxu0 0
        %797 = vmatpush1.bf16.msra.mxu0 0
        %798 = vmatprep.subr.bf16.mxu0 0
        %799 = vmatpush1.bf16.msra.mxu0 0
        %800 = vmatprep.mubr.bf16.mxu0 0
        %801 = vmatmul.mubr.bf16.gmra.mrb[0].mxu0 %v696
        %v802 = vpop.f32.mrb[0].mxu0
        %v803 = vadd.f32 %v718, %v802
        %v804 = vpop.f32.mrb[0].mxu0
        %v805 = vpop.f32.mrb[0].mxu0
        %v806 = vadd.f32 %v718, %v805
        %v807 = vpop.f32.mrb[0].mxu0
        %808 = vdwg.mxu0
        %v809 = vmax.f32 %v803, 0.0
        %v810 = vmax.f32 %v806, 0.0
        %v811 = vpack.c.bf16 %v810, %v809
        %812 = vst [vmem:[#allocation2] sm:$0xff] %v811
        %p813 = scmp.eq.s32.totalorder %s26, 1
        // Predicated region
        $region93: #{tpu_custom_call.1} parent=63 // pred_check
          %p814 = pneg %p813
        $region94: #{tpu_custom_call.1} parent=63 // pred_check_branch
          %816 = sbr.rel (%p814) target = $region96
        $region95: #{tpu_custom_call.1} parent=63 // pred_region
          %v817 = vld [vmem:[%s6] sm:$0xf]
          %v819 = vsel %vm536, %v817, 0
          %821 = vmatprep.subr.bf16.mxu0 0
          %822 = vmatpush1.bf16.msra.mxu0 %v811
          %823 = vmatprep.subr.bf16.mxu0 0
          %824 = vmatpush1.bf16.msra.mxu0 0
          %825 = vmatprep.subr.bf16.mxu0 0
          %826 = vmatpush1.bf16.msra.mxu0 0
          %827 = vmatprep.subr.bf16.mxu0 0
          %828 = vmatpush1.bf16.msra.mxu0 0
          %829 = vmatprep.subr.bf16.mxu0 0
          %830 = vmatpush1.bf16.msra.mxu0 0
          %831 = vmatprep.subr.bf16.mxu0 0
          %832 = vmatpush1.bf16.msra.mxu0 0
          %833 = vmatprep.subr.bf16.mxu0 0
          %834 = vmatpush1.bf16.msra.mxu0 0
          %835 = vmatprep.subr.bf16.mxu0 0
          %836 = vmatpush1.bf16.msra.mxu0 0
          %837 = vmatprep.subr.bf16.mxu0 0
          %838 = vmatpush1.bf16.msra.mxu0 0
          %839 = vmatprep.subr.bf16.mxu0 0
          %840 = vmatpush1.bf16.msra.mxu0 0
          %841 = vmatprep.subr.bf16.mxu0 0
          %842 = vmatpush1.bf16.msra.mxu0 0
          %843 = vmatprep.subr.bf16.mxu0 0
          %844 = vmatpush1.bf16.msra.mxu0 0
          %845 = vmatprep.subr.bf16.mxu0 0
          %846 = vmatpush1.bf16.msra.mxu0 0
          %847 = vmatprep.subr.bf16.mxu0 0
          %848 = vmatpush1.bf16.msra.mxu0 0
          %849 = vmatprep.subr.bf16.mxu0 0
          %850 = vmatpush1.bf16.msra.mxu0 0
          %851 = vmatprep.subr.bf16.mxu0 0
          %852 = vmatpush1.bf16.msra.mxu0 0
          %853 = vmatprep.mubr.bf16.mxu0 0
          %854 = vmatmul.mubr.bf16.gmra.mrb[0].mxu0 %v819
          %v855 = vpop.f32.mrb[0].mxu0
          %v856 = vadd.f32 0.0, %v855
          %v857 = vpop.f32.mrb[0].mxu0
          %v858 = vpop.f32.mrb[0].mxu0
          %v859 = vpop.f32.mrb[0].mxu0
          %860 = vdwg.mxu0
          %v861 = vpack.c.bf16 %v856, %v856
          %v862 = vld [vmem:[#allocation10] sm:$0xf]
          %v863 = vld [vmem:[#allocation10 + $0x4] sm:$0xf]
          %v864 = vld [vmem:[#allocation10 + $0x8] sm:$0xf]
          %v865 = vld [vmem:[#allocation10 + $0xc] sm:$0xf]
          %v866 = vld [vmem:[#allocation10 + $0x10] sm:$0xf]
          %v867 = vld [vmem:[#allocation10 + $0x14] sm:$0xf]
          %v868 = vld [vmem:[#allocation10 + $0x18] sm:$0xf]
          %v869 = vld [vmem:[#allocation10 + $0x1c] sm:$0xf]
          %v870 = vld [vmem:[#allocation10 + $0x20] sm:$0xf]
          %v871 = vld [vmem:[#allocation10 + $0x24] sm:$0xf]
          %v872 = vld [vmem:[#allocation10 + $0x28] sm:$0xf]
          %v873 = vld [vmem:[#allocation10 + $0x2c] sm:$0xf]
          %v874 = vld [vmem:[#allocation10 + $0x30] sm:$0xf]
          %v875 = vld [vmem:[#allocation10 + $0x34] sm:$0xf]
          %v876 = vld [vmem:[#allocation10 + $0x38] sm:$0xf]
          %v877 = vld [vmem:[#allocation10 + $0x3c] sm:$0xf]
          %v878 = vld [vmem:[%s8] sm:$0x1]
          %v880 = vlaneseq
          %v881 = vshrl.u32 %v880, 7
          %v882 = vsub.s32 0, %v881
          %v883 = vrot.slane %v878, %v882
          %v901 = vunpack.c.l.b16 %v862
          %v902 = vunpack.c.l.b16 %v863
          %v903 = vunpack.c.l.b16 %v864
          %v904 = vunpack.c.l.b16 %v865
          %v905 = vunpack.c.l.b16 %v866
          %v906 = vunpack.c.l.b16 %v867
          %v907 = vunpack.c.l.b16 %v868
          %v908 = vunpack.c.l.b16 %v869
          %v909 = vunpack.c.l.b16 %v870
          %v910 = vunpack.c.l.b16 %v871
          %v911 = vunpack.c.l.b16 %v872
          %v912 = vunpack.c.l.b16 %v873
          %v913 = vunpack.c.l.b16 %v874
          %v914 = vunpack.c.l.b16 %v875
          %v915 = vunpack.c.l.b16 %v876
          %v916 = vunpack.c.l.b16 %v877
          %v917 = vpack.c.b16 %v902, %v901
          %v918 = vpack.c.b16 %v904, %v903
          %v919 = vpack.c.b16 %v906, %v905
          %v920 = vpack.c.b16 %v908, %v907
          %v921 = vpack.c.b16 %v910, %v909
          %v922 = vpack.c.b16 %v912, %v911
          %v923 = vpack.c.b16 %v914, %v913
          %v924 = vpack.c.b16 %v916, %v915
          %933 = vmatprep.subr.bf16.mxu0 0
          %934 = vmatpush1.bf16.msra.mxu0 %v917
          %935 = vmatprep.subr.bf16.mxu0 0
          %936 = vmatpush1.bf16.msra.mxu0 %v918
          %937 = vmatprep.subr.bf16.mxu0 0
          %938 = vmatpush1.bf16.msra.mxu0 %v919
          %939 = vmatprep.subr.bf16.mxu0 0
          %940 = vmatpush1.bf16.msra.mxu0 %v920
          %941 = vmatprep.subr.bf16.mxu0 0
          %942 = vmatpush1.bf16.msra.mxu0 %v921
          %943 = vmatprep.subr.bf16.mxu0 0
          %944 = vmatpush1.bf16.msra.mxu0 %v922
          %945 = vmatprep.subr.bf16.mxu0 0
          %946 = vmatpush1.bf16.msra.mxu0 %v923
          %947 = vmatprep.subr.bf16.mxu0 0
          %948 = vmatpush1.bf16.msra.mxu0 %v924
          %949 = vmatprep.subr.bf16.mxu0 0
          %950 = vmatpush1.bf16.msra.mxu0 0
          %951 = vmatprep.subr.bf16.mxu0 0
          %952 = vmatpush1.bf16.msra.mxu0 0
          %953 = vmatprep.subr.bf16.mxu0 0
          %954 = vmatpush1.bf16.msra.mxu0 0
          %955 = vmatprep.subr.bf16.mxu0 0
          %956 = vmatpush1.bf16.msra.mxu0 0
          %957 = vmatprep.subr.bf16.mxu0 0
          %958 = vmatpush1.bf16.msra.mxu0 0
          %959 = vmatprep.subr.bf16.mxu0 0
          %960 = vmatpush1.bf16.msra.mxu0 0
          %961 = vmatprep.subr.bf16.mxu0 0
          %962 = vmatpush1.bf16.msra.mxu0 0
          %963 = vmatprep.subr.bf16.mxu0 0
          %964 = vmatpush1.bf16.msra.mxu0 0
          %965 = vmatprep.mubr.bf16.mxu0 0
          %966 = vmatmul.mubr.bf16.gmra.mrb[0].mxu0 %v861
          %v967 = vpop.f32.mrb[0].mxu0
          %v968 = vadd.f32 %v883, %v967
          %v969 = vpop.f32.mrb[0].mxu0
          %v970 = vpop.f32.mrb[0].mxu0
          %v971 = vpop.f32.mrb[0].mxu0
          %972 = vdwg.mxu0
          %v973 = vmax.f32 %v968, 0.0
          %v974 = vpack.c.bf16 %v973, %v973
          %v975 = vld [vmem:[#allocation11] sm:$0xf]
          %v976 = vld [vmem:[#allocation11 + $0x4] sm:$0xf]
          %v977 = vld [vmem:[#allocation11 + $0x8] sm:$0xf]
          %v978 = vld [vmem:[#allocation11 + $0xc] sm:$0xf]
          %v979 = vld [vmem:[#allocation11 + $0x10] sm:$0xf]
          %v980 = vld [vmem:[#allocation11 + $0x14] sm:$0xf]
          %v981 = vld [vmem:[#allocation11 + $0x18] sm:$0xf]
          %v982 = vld [vmem:[#allocation11 + $0x1c] sm:$0xf]
          %v983 = vld [vmem:[#allocation11 + $0x20] sm:$0xf]
          %v984 = vld [vmem:[#allocation11 + $0x24] sm:$0xf]
          %v985 = vld [vmem:[#allocation11 + $0x28] sm:$0xf]
          %v986 = vld [vmem:[#allocation11 + $0x2c] sm:$0xf]
          %v987 = vld [vmem:[#allocation11 + $0x30] sm:$0xf]
          %v988 = vld [vmem:[#allocation11 + $0x34] sm:$0xf]
          %v989 = vld [vmem:[#allocation11 + $0x38] sm:$0xf]
          %v990 = vld [vmem:[#allocation11 + $0x3c] sm:$0xf]
          %v991 = vld [vmem:[%s10] sm:$0x1]
          %v993 = vlaneseq
          %v994 = vshrl.u32 %v993, 7
          %v995 = vsub.s32 0, %v994
          %v996 = vrot.slane %v991, %v995
          %v1014 = vunpack.c.l.b16 %v975
          %v1015 = vunpack.c.l.b16 %v976
          %v1016 = vunpack.c.l.b16 %v977
          %v1017 = vunpack.c.l.b16 %v978
          %v1018 = vunpack.c.l.b16 %v979
          %v1019 = vunpack.c.l.b16 %v980
          %v1020 = vunpack.c.l.b16 %v981
          %v1021 = vunpack.c.l.b16 %v982
          %v1022 = vunpack.c.l.b16 %v983
          %v1023 = vunpack.c.l.b16 %v984
          %v1024 = vunpack.c.l.b16 %v985
          %v1025 = vunpack.c.l.b16 %v986
          %v1026 = vunpack.c.l.b16 %v987
          %v1027 = vunpack.c.l.b16 %v988
          %v1028 = vunpack.c.l.b16 %v989
          %v1029 = vunpack.c.l.b16 %v990
          %v1030 = vpack.c.b16 %v1015, %v1014
          %v1031 = vpack.c.b16 %v1017, %v1016
          %v1032 = vpack.c.b16 %v1019, %v1018
          %v1033 = vpack.c.b16 %v1021, %v1020
          %v1034 = vpack.c.b16 %v1023, %v1022
          %v1035 = vpack.c.b16 %v1025, %v1024
          %v1036 = vpack.c.b16 %v1027, %v1026
          %v1037 = vpack.c.b16 %v1029, %v1028
          %1046 = vmatprep.subr.bf16.mxu0 0
          %1047 = vmatpush1.bf16.msra.mxu0 %v1030
          %1048 = vmatprep.subr.bf16.mxu0 0
          %1049 = vmatpush1.bf16.msra.mxu0 %v1031
          %1050 = vmatprep.subr.bf16.mxu0 0
          %1051 = vmatpush1.bf16.msra.mxu0 %v1032
          %1052 = vmatprep.subr.bf16.mxu0 0
          %1053 = vmatpush1.bf16.msra.mxu0 %v1033
          %1054 = vmatprep.subr.bf16.mxu0 0
          %1055 = vmatpush1.bf16.msra.mxu0 %v1034
          %1056 = vmatprep.subr.bf16.mxu0 0
          %1057 = vmatpush1.bf16.msra.mxu0 %v1035
          %1058 = vmatprep.subr.bf16.mxu0 0
          %1059 = vmatpush1.bf16.msra.mxu0 %v1036
          %1060 = vmatprep.subr.bf16.mxu0 0
          %1061 = vmatpush1.bf16.msra.mxu0 %v1037
          %1062 = vmatprep.subr.bf16.mxu0 0
          %1063 = vmatpush1.bf16.msra.mxu0 0
          %1064 = vmatprep.subr.bf16.mxu0 0
          %1065 = vmatpush1.bf16.msra.mxu0 0
          %1066 = vmatprep.subr.bf16.mxu0 0
          %1067 = vmatpush1.bf16.msra.mxu0 0
          %1068 = vmatprep.subr.bf16.mxu0 0
          %1069 = vmatpush1.bf16.msra.mxu0 0
          %1070 = vmatprep.subr.bf16.mxu0 0
          %1071 = vmatpush1.bf16.msra.mxu0 0
          %1072 = vmatprep.subr.bf16.mxu0 0
          %1073 = vmatpush1.bf16.msra.mxu0 0
          %1074 = vmatprep.subr.bf16.mxu0 0
          %1075 = vmatpush1.bf16.msra.mxu0 0
          %1076 = vmatprep.subr.bf16.mxu0 0
          %1077 = vmatpush1.bf16.msra.mxu0 0
          %1078 = vmatprep.mubr.bf16.mxu0 0
          %1079 = vmatmul.mubr.bf16.gmra.mrb[0].mxu0 %v974
          %v1080 = vpop.f32.mrb[0].mxu0
          %v1081 = vadd.f32 %v996, %v1080
          %v1082 = vpop.f32.mrb[0].mxu0
          %v1083 = vpop.f32.mrb[0].mxu0
          %v1084 = vpop.f32.mrb[0].mxu0
          %1085 = vdwg.mxu0
          %1086 = vst [vmem:[#allocation13] sm:$0xff] %v1081
        $region96: #{tpu_custom_call.1} parent=63 // pred_fallthru
          _
        // Predicated region
        $region97: #{tpu_custom_call.1} parent=63 // pred_check
          %p1087 = pneg %p290
        $region98: #{tpu_custom_call.1} parent=63 // pred_check_branch
          %1089 = sbr.rel (%p1087) target = $region100
        $region99: #{tpu_custom_call.1} parent=63 // pred_region
          %s1091 = ssub.s32 128, 128
          %1092 = vsyncadd [#allocation5], %s1091
          %s1094 = sshll.u32 [#allocation13], 4
          %s1095 = int_to_ptr.vmem [resolvable:$true] %s1094
          %1097 = dma.vmem_to_hbm [thread:$0]  %s1095, 128, %s11, [#allocation5]
        $region100: #{tpu_custom_call.1} parent=63 // pred_fallthru
          _
        // Predicated region
        $region101: #{tpu_custom_call.1} parent=63 // pred_check
          %p1098 = pneg %p290
        $region102: #{tpu_custom_call.1} parent=63 // pred_check_branch
          %1100 = sbr.rel (%p1098) target = $region104
        $region103: #{tpu_custom_call.1} parent=63 // pred_region
          %1101 = dma.done [#allocation5], 128
        $region104: #{tpu_custom_call.1} parent=63 // pred_fallthru
          _
      $region64: #{tpu_custom_call.1} parent=5 // pred_fallthru
        _
      %p1102 = scmp.le.s32.totalorder 2, %s21
      // Predicated region
      $region105: #{tpu_custom_call.1} parent=5 // pred_check
        %p1103 = pneg %p1102
      $region106: #{tpu_custom_call.1} parent=5 // pred_check_branch
        %1105 = sbr.rel (%p1103) target = $region108
      $region107: #{tpu_custom_call.1} parent=5 // pred_region
        %s1106 = ssub.s32 %s21, 2
      $region108: #{tpu_custom_call.1} parent=5 // pred_fallthru
        _
    $region6: #{tpu_custom_call.1} parent=1 // loop_footer
      %s25 = sadd.s32 1, %s21
    $region7: #{tpu_custom_call.1} parent=1 // loop_footer_branch
      %20 = sbr.rel target = $region3
    $region8: #{tpu_custom_call.1} parent=1 // loop_exit
      _
    %1107 = vsyncpa [#allocation4], 1
    %s1108 = scalar_lea.sflag [#allocation4], 1
    %1109 = vsyncpa %s1108, 1
    %1110 = vsyncpa [#allocation7], 1
    %1111 = vsyncpa [#allocation12], 1
    %1112 = vsyncpa [#allocation5], 1
    %s1113 = scalar_lea.sflag [#allocation5], 1
    %1114 = vsyncpa %s1113, 1

</llo_original>
